<compile_context>
chip_gen: v7x
topology: tpu7x:2x2x1
jax: 0.10.0
libtpu: 0.0.40
codegen_flags: <defaults>
</compile_context>

<pallas_src>
import functools

import jax
import jax.numpy as jnp
from jax.experimental import pallas as pl
from jax.experimental.pallas import tpu as pltpu


LANE = 128  # TPU lane width; hidden/filter dims are padded to a multiple.

_PARAM_ORDER = ('wq', 'bq', 'wk', 'bk', 'wv', 'bv', 'wo', 'bo',
                'g1', 'beta1', 'w1', 'b1', 'w2', 'b2', 'g2', 'beta2')


# ----------------------------- Pallas kernel ------------------------------ #

def _masked_layer_norm(y, gamma, beta, n_valid, eps=1e-5):
    """LayerNorm over the first n_valid columns of a zero-padded slab.

    Padded columns of `y` are exactly zero (zero-padded weights/biases), so
    full-width sums equal the valid-column sums; divide by n_valid.  Variance
    is single-pass (E[y^2] - mu^2).  Padded gamma/beta are zero, so padded
    output columns stay exactly zero.
    """
    inv_n = 1.0 / float(n_valid)
    mu = jnp.sum(y, axis=-1, keepdims=True) * inv_n
    var = jnp.sum(y * y, axis=-1, keepdims=True) * inv_n - mu * mu
    return (y - mu) * jax.lax.rsqrt(var + eps) * gamma + beta


def encoder_stack_kernel(x_ref, mask_ref,
                         wq_ref, bq_ref, wk_ref, bk_ref, wv_ref, bv_ref,
                         wo_ref, bo_ref, g1_ref, beta1_ref,
                         w1_ref, b1_ref, w2_ref, b2_ref,
                         g2_ref, beta2_ref,
                         o_ref, *, num_heads, hidden, head_dim):
    S, Hp = o_ref.shape
    hd_p = Hp // num_heads
    scale = 1.0 / float(head_dim) ** 0.5   # PyTorch uses d_k = head_dim (=8)

    # Layer 0: seed the resident (VMEM) activation block from the padded input.
    @pl.when(pl.program_id(1) == 0)
    def _():
        o_ref[...] = x_ref[...]

    x2 = o_ref[...]                                   # [S, Hp] f32 residual
    xb = x2.astype(jnp.bfloat16)                      # bf16 MXU operand

    # --- Multi-head attention ------------------------------------------------
    q = jnp.dot(xb, wq_ref[...], preferred_element_type=jnp.float32) + bq_ref[...]
    k = jnp.dot(xb, wk_ref[...], preferred_element_type=jnp.float32) + bk_ref[...]
    v = jnp.dot(xb, wv_ref[...], preferred_element_type=jnp.float32) + bv_ref[...]

    # Head-batched layout [h, S, hd_p]; padded head dims are exactly zero.
    q4 = q.reshape(S, num_heads, hd_p).swapaxes(0, 1).astype(jnp.bfloat16)
    k4 = k.reshape(S, num_heads, hd_p).swapaxes(0, 1).astype(jnp.bfloat16)
    v4 = v.reshape(S, num_heads, hd_p).swapaxes(0, 1).astype(jnp.bfloat16)

    # Additive key-padding bias, computed once per grid step.  [1, S]
    bias = jnp.where(mask_ref[...] == 0, jnp.float32(-1e9), jnp.float32(0.0))

    s = jnp.einsum('hqd,hkd->hqk', q4, k4,
                   preferred_element_type=jnp.float32) * scale      # [h,S,S] f32
    s = s + bias[None, :, :]                     # broadcast over heads & queries
    s = s - jnp.max(s, axis=-1, keepdims=True)
    p = jnp.exp(s)
    # approx=True uses the EUP slot (~free); exact parity would need approx=False.
    inv = pl.reciprocal(jnp.sum(p, axis=-1, keepdims=True), approx=True)
    attn = (p * inv).astype(jnp.bfloat16)

    ctx = jnp.einsum('hqk,hkd->hqd', attn, v4,
                     preferred_element_type=jnp.float32)            # [h,S,hd_p]
    # Merge (head, dim) back onto the lane axis -> ONE output-projection matmul.
    ctx2 = ctx.swapaxes(0, 1).reshape(S, Hp).astype(jnp.bfloat16)   # [S, Hp]
    proj = jnp.dot(ctx2, wo_ref[...],
                   preferred_element_type=jnp.float32) + bo_ref[...]

    attn_out = _masked_layer_norm(proj + x2, g1_ref[...], beta1_ref[...], hidden)

    # --- Feed-forward ----------------------------------------------------------
    h1 = jnp.maximum(
        jnp.dot(attn_out.astype(jnp.bfloat16), w1_ref[...],
                preferred_element_type=jnp.float32) + b1_ref[...], 0.0)
    h2 = jnp.dot(h1.astype(jnp.bfloat16), w2_ref[...],
                 preferred_element_type=jnp.float32) + b2_ref[...]
    o_ref[...] = _masked_layer_norm(h2 + attn_out, g2_ref[...], beta2_ref[...],
                                    hidden)


# ----------------------------- wrapper / glue ------------------------------ #

def encoder_stack(x, mask, packed, *, num_heads, hidden):
    """x: [B, S, hidden] f32, mask: [B, S] int, packed[k]: [L, ...] padded weights."""
    B, S, H = x.shape
    assert H == hidden
    L, Hp, _ = packed['wq'].shape
    Fp = packed['w1'].shape[-1]
    head_dim = hidden // num_heads

    # Zero-pad the activation lane dim; padded columns stay zero end-to-end.
    x_p = jnp.pad(x.astype(jnp.float32), ((0, 0), (0, 0), (0, Hp - H)))
    x_p = x_p.reshape(B * S, Hp)
    mask3 = mask.astype(jnp.int32).reshape(B, 1, S)

    weights = [packed[kname] for kname in _PARAM_ORDER]

    def wspec(a):
        rest = a.shape[1:]
        n = len(rest)
        # Leading layer dim squeezed; full (padded) weight per step, indexed by l.
        return pl.BlockSpec((None,) + rest, lambda b, l, _n=n: (l,) + (0,) * _n)

    in_specs = [
        pl.BlockSpec((S, Hp), lambda b, l: (b, 0)),           # padded input rows
        pl.BlockSpec((None, 1, S), lambda b, l: (b, 0, 0)),   # per-batch mask row
    ] + [wspec(w) for w in weights]
    out_spec = pl.BlockSpec((S, Hp), lambda b, l: (b, 0))     # resident across l

    # Advisory cost estimate so XLA schedules surrounding ops sensibly.
    matmul_flops = 2 * S * Hp * Hp * 4 + 2 * S * Hp * Fp * 2
    attn_flops = 2 * num_heads * S * S * (Hp // num_heads) * 2
    weight_bytes = sum(int(w.size) * w.dtype.itemsize for w in weights)
    cost = pl.CostEstimate(
        flops=int(B * L * (matmul_flops + attn_flops)),
        transcendentals=int(B * L * num_heads * S * S),
        bytes_accessed=int(B * weight_bytes + 2 * x_p.size * 4 + mask3.size * 4),
    )

    kernel = functools.partial(encoder_stack_kernel, num_heads=num_heads,
                               hidden=hidden, head_dim=head_dim)
    y = pl.pallas_call(
        kernel,
        out_shape=jax.ShapeDtypeStruct((B * S, Hp), jnp.float32),
        grid=(B, L),
        in_specs=in_specs,
        out_specs=out_spec,
        compiler_params=pltpu.CompilerParams(
            dimension_semantics=("parallel", "arbitrary"),
            vmem_limit_bytes=32 * 1024 * 1024),
        cost_estimate=cost,
    )(x_p, mask3, *weights)
    return y.reshape(B, S, Hp)[:, :, :H]


def positional_encoding(max_len, hidden):
    position = jnp.arange(max_len, dtype=jnp.float32)[:, None]
    div_term = jnp.exp(jnp.arange(0, hidden, 2, dtype=jnp.float32) *
                       (-jnp.log(10000.0) / hidden))
    pe = jnp.zeros((max_len, hidden), jnp.float32)
    pe = pe.at[:, 0::2].set(jnp.sin(position * div_term))
    pe = pe.at[:, 1::2].set(jnp.cos(position * div_term))
    return pe


def init_params(key, vocab, hidden, filter_size, num_layers, max_len=512):
    params = {}
    key, k_emb = jax.random.split(key)
    params['embedding'] = jax.random.normal(k_emb, (vocab, hidden), jnp.float32)
    params['pe'] = positional_encoding(max_len, hidden)

    def lin(k, din, dout):
        w = 0.02 * jax.random.normal(k, (din, dout), jnp.float32)
        b = jnp.zeros((1, dout), jnp.float32)
        return w, b

    layers = []
    for l in range(num_layers):
        ks = jax.random.split(jax.random.fold_in(key, l), 6)
        lp = {}
        lp['wq'], lp['bq'] = lin(ks[0], hidden, hidden)
        lp['wk'], lp['bk'] = lin(ks[1], hidden, hidden)
        lp['wv'], lp['bv'] = lin(ks[2], hidden, hidden)
        lp['wo'], lp['bo'] = lin(ks[3], hidden, hidden)
        lp['g1'] = jnp.ones((1, hidden), jnp.float32)
        lp['beta1'] = jnp.zeros((1, hidden), jnp.float32)
        lp['w1'], lp['b1'] = lin(ks[4], hidden, filter_size)
        lp['w2'], lp['b2'] = lin(ks[5], filter_size, hidden)
        lp['g2'] = jnp.ones((1, hidden), jnp.float32)
        lp['beta2'] = jnp.zeros((1, hidden), jnp.float32)
        layers.append(lp)
    params['layers'] = layers
    return params


def pack_layer_params(layers, hidden, filter_size, num_heads):
    """Zero-pad per-layer weights to lane-dense shapes, stack along L, and cast
    matmul weights to bf16.  Q/K/V are padded per head (columns) and the output
    projection per head (rows), so the head split stays aligned in the padded
    layout.  Zero-padded rows/cols/biases/gamma/beta keep results identical to
    the unpadded math and keep padded activation columns exactly zero."""
    hp = max(LANE, -(-hidden // LANE) * LANE)
    fp = max(LANE, -(-filter_size // LANE) * LANE)
    assert hp % num_heads == 0
    hd = hidden // num_heads
    hd_p = hp // num_heads
    assert hd_p >= hd

    def pad_qkv_w(w):            # [H, H] -> [Hp, Hp] (per-head column padding)
        w = w.reshape(hidden, num_heads, hd)
        w = jnp.pad(w, ((0, hp - hidden), (0, 0), (0, hd_p - hd)))
        return w.reshape(hp, hp)

    def pad_qkv_b(b):            # [1, H] -> [1, Hp]
        b = b.reshape(1, num_heads, hd)
        b = jnp.pad(b, ((0, 0), (0, 0), (0, hd_p - hd)))
        return b.reshape(1, hp)

    def pad_out_w(w):            # [H, H] -> [Hp, Hp] (per-head row padding)
        w = w.reshape(num_heads, hd, hidden)
        w = jnp.pad(w, ((0, 0), (0, hd_p - hd), (0, hp - hidden)))
        return w.reshape(hp, hp)

    def pad_cols(a, cols):       # [1, n] -> [1, cols]
        return jnp.pad(a, ((0, 0), (0, cols - a.shape[1])))

    def pad_mat(w, rows, cols):
        return jnp.pad(w, ((0, rows - w.shape[0]), (0, cols - w.shape[1])))

    packed_layers = []
    for lp in layers:
        packed_layers.append({
            'wq': pad_qkv_w(lp['wq']), 'bq': pad_qkv_b(lp['bq']),
            'wk': pad_qkv_w(lp['wk']), 'bk': pad_qkv_b(lp['bk']),
            'wv': pad_qkv_w(lp['wv']), 'bv': pad_qkv_b(lp['bv']),
            'wo': pad_out_w(lp['wo']), 'bo': pad_cols(lp['bo'], hp),
            'g1': pad_cols(lp['g1'], hp), 'beta1': pad_cols(lp['beta1'], hp),
            'w1': pad_mat(lp['w1'], hp, fp), 'b1': pad_cols(lp['b1'], fp),
            'w2': pad_mat(lp['w2'], fp, hp), 'b2': pad_cols(lp['b2'], hp),
            'g2': pad_cols(lp['g2'], hp), 'beta2': pad_cols(lp['beta2'], hp),
        })

    stacked = {kname: jnp.stack([p[kname] for p in packed_layers], axis=0)
               for kname in _PARAM_ORDER}
    # bf16 MXU operands (halves weight DMA); biases / LN params stay f32.
    for kname in ('wq', 'wk', 'wv', 'wo', 'w1', 'w2'):
        stacked[kname] = stacked[kname].astype(jnp.bfloat16)
    return stacked


def encoder_forward(source_ids, source_mask, params, packed, num_heads, hidden):
    # Embedding lookup (plain-JAX glue; gather has no clean Pallas win here).
    x = jnp.take(params['embedding'], source_ids, axis=0)      # [B, S, H]
    B = x.shape[0]
    # Faithful reproduction of the PyTorch module: pe has shape [max_len, 1, H]
    # and `x + pe[:x.size(0)]` indexes the *batch* dim, broadcasting over seq.
    x = x + params['pe'][:B][:, None, :]
    # Dropout layers are identity at inference time.
    return encoder_stack(x, source_mask, packed, num_heads=num_heads,
                         hidden=hidden)


# --------------------------------- main ------------------------------------ #

if __name__ == "__main__":
    VOCAB = 100
    HIDDEN = 32
    NUM_HEADS = 4
    FILTER = 64
    NUM_LAYERS = 2
    B, S = 2, 8

    key = jax.random.PRNGKey(0)
    params = init_params(key, VOCAB, HIDDEN, FILTER, NUM_LAYERS)
    packed = pack_layer_params(params['layers'], HIDDEN, FILTER, NUM_HEADS)

    kid, _ = jax.random.split(jax.random.PRNGKey(0))
    source_ids = jax.random.randint(kid, (B, S), 0, VOCAB, dtype=jnp.int32)
    # Padding mask: 1 = valid token, 0 = pad (last two positions of batch 1).
    source_mask = jnp.array([[1, 1, 1, 1, 1, 1, 1, 1],
                             [1, 1, 1, 1, 1, 1, 0, 0]], dtype=jnp.int32)

    out = encoder_forward(source_ids, source_mask, params, packed,
                          NUM_HEADS, HIDDEN)
    out = jax.block_until_ready(out)
    assert out.shape == (B, S, HIDDEN)
    assert bool(jnp.all(jnp.isfinite(out)))
    print("KERNEL_OK")
</pallas_src>

<mosaic_0001>
module attributes {stable_mosaic.version = 11 : i64} {
  func.func @encoder_stack_kernel(%arg0: i32, %arg1: i32, %arg2: memref<8x128xf32, #tpu.memory_space<vmem>>, %arg3: memref<1x1x8xi32, #tpu.memory_space<vmem>>, %arg4: memref<1x128x128xbf16, #tpu.memory_space<vmem>>, %arg5: memref<1x1x128xf32, #tpu.memory_space<vmem>>, %arg6: memref<1x128x128xbf16, #tpu.memory_space<vmem>>, %arg7: memref<1x1x128xf32, #tpu.memory_space<vmem>>, %arg8: memref<1x128x128xbf16, #tpu.memory_space<vmem>>, %arg9: memref<1x1x128xf32, #tpu.memory_space<vmem>>, %arg10: memref<1x128x128xbf16, #tpu.memory_space<vmem>>, %arg11: memref<1x1x128xf32, #tpu.memory_space<vmem>>, %arg12: memref<1x1x128xf32, #tpu.memory_space<vmem>>, %arg13: memref<1x1x128xf32, #tpu.memory_space<vmem>>, %arg14: memref<1x128x128xbf16, #tpu.memory_space<vmem>>, %arg15: memref<1x1x128xf32, #tpu.memory_space<vmem>>, %arg16: memref<1x128x128xbf16, #tpu.memory_space<vmem>>, %arg17: memref<1x1x128xf32, #tpu.memory_space<vmem>>, %arg18: memref<1x1x128xf32, #tpu.memory_space<vmem>>, %arg19: memref<1x1x128xf32, #tpu.memory_space<vmem>>, %arg20: memref<8x128xf32, #tpu.memory_space<vmem>>) attributes {dimension_semantics = [#tpu.dimension_semantics<parallel>, #tpu.dimension_semantics<arbitrary>], iteration_bounds = array<i64: 2, 2>, scalar_prefetch = 0 : i64, scratch_operands = 0 : i64, tpu.core_type = #tpu.core_type<tc>, window_params = [{transform_indices = @transform_0, window_bounds = array<i64: 8, 128>}, {transform_indices = @transform_1, window_bounds = array<i64: 1, 1, 8>}, {transform_indices = @transform_2, window_bounds = array<i64: 1, 128, 128>}, {transform_indices = @transform_3, window_bounds = array<i64: 1, 1, 128>}, {transform_indices = @transform_4, window_bounds = array<i64: 1, 128, 128>}, {transform_indices = @transform_5, window_bounds = array<i64: 1, 1, 128>}, {transform_indices = @transform_6, window_bounds = array<i64: 1, 128, 128>}, {transform_indices = @transform_7, window_bounds = array<i64: 1, 1, 128>}, {transform_indices = @transform_8, window_bounds = array<i64: 1, 128, 128>}, {transform_indices = @transform_9, window_bounds = array<i64: 1, 1, 128>}, {transform_indices = @transform_10, window_bounds = array<i64: 1, 1, 128>}, {transform_indices = @transform_11, window_bounds = array<i64: 1, 1, 128>}, {transform_indices = @transform_12, window_bounds = array<i64: 1, 128, 128>}, {transform_indices = @transform_13, window_bounds = array<i64: 1, 1, 128>}, {transform_indices = @transform_14, window_bounds = array<i64: 1, 128, 128>}, {transform_indices = @transform_15, window_bounds = array<i64: 1, 1, 128>}, {transform_indices = @transform_16, window_bounds = array<i64: 1, 1, 128>}, {transform_indices = @transform_17, window_bounds = array<i64: 1, 1, 128>}, {transform_indices = @transform_18, window_bounds = array<i64: 8, 128>}]} {
    %c0_i32 = arith.constant 0 : i32
    %0 = arith.cmpi eq, %arg1, %c0_i32 : i32
    %1 = arith.extui %0 : i1 to i32
    %c0_i32_0 = arith.constant 0 : i32
    %2 = arith.cmpi ne, %1, %c0_i32_0 : i32
    scf.if %2 {
      %c0_79 = arith.constant 0 : index
      %c0_80 = arith.constant 0 : index
      %143 = vector.load %arg2[%c0_79, %c0_80] : memref<8x128xf32, #tpu.memory_space<vmem>>, vector<8x128xf32>
      %c0_81 = arith.constant 0 : index
      %c0_82 = arith.constant 0 : index
      %144 = vector.load %arg20[%c0_81, %c0_82] : memref<8x128xf32, #tpu.memory_space<vmem>>, vector<8x128xf32>
      tpu.vector_store %arg20[%c0_81, %c0_82], %143 {strides = array<i32>} : memref<8x128xf32, #tpu.memory_space<vmem>>, vector<8x128xf32>,
    } else {
    }
    %c0 = arith.constant 0 : index
    %c0_1 = arith.constant 0 : index
    %3 = vector.load %arg20[%c0, %c0_1] : memref<8x128xf32, #tpu.memory_space<vmem>>, vector<8x128xf32>
    %4 = arith.truncf %3 : vector<8x128xf32> to vector<8x128xbf16>
    %c0_2 = arith.constant 0 : index
    %c0_3 = arith.constant 0 : index
    %c0_4 = arith.constant 0 : index
    %5 = vector.load %arg4[%c0_2, %c0_3, %c0_4] : memref<1x128x128xbf16, #tpu.memory_space<vmem>>, vector<1x128x128xbf16>
    %6 = vector.shape_cast %5 : vector<1x128x128xbf16> to vector<128x128xbf16>
    %cst = arith.constant dense<0.000000e+00> : vector<8x128xf32>
    %7 = tpu.matmul %4, %6, %cst {dimension_numbers = #tpu.dot_dimension_numbers<[1], [0], [0], [1], [0, 0, 1, 1], [], []>} : vector<8x128xbf16>, vector<128x128xbf16>, vector<8x128xf32> -> vector<8x128xf32>
    %c0_5 = arith.constant 0 : index
    %c0_6 = arith.constant 0 : index
    %c0_7 = arith.constant 0 : index
    %8 = vector.load %arg5[%c0_5, %c0_6, %c0_7] : memref<1x1x128xf32, #tpu.memory_space<vmem>>, vector<1x1x128xf32>
    %9 = vector.shape_cast %8 : vector<1x1x128xf32> to vector<1x128xf32>
    %10 = vector.broadcast %9 : vector<1x128xf32> to vector<8x128xf32>
    %11 = arith.addf %7, %10 : vector<8x128xf32>
    %c0_8 = arith.constant 0 : index
    %c0_9 = arith.constant 0 : index
    %c0_10 = arith.constant 0 : index
    %12 = vector.load %arg6[%c0_8, %c0_9, %c0_10] : memref<1x128x128xbf16, #tpu.memory_space<vmem>>, vector<1x128x128xbf16>
    %13 = vector.shape_cast %12 : vector<1x128x128xbf16> to vector<128x128xbf16>
    %cst_11 = arith.constant dense<0.000000e+00> : vector<8x128xf32>
    %14 = tpu.matmul %4, %13, %cst_11 {dimension_numbers = #tpu.dot_dimension_numbers<[1], [0], [0], [1], [0, 0, 1, 1], [], []>} : vector<8x128xbf16>, vector<128x128xbf16>, vector<8x128xf32> -> vector<8x128xf32>
    %c0_12 = arith.constant 0 : index
    %c0_13 = arith.constant 0 : index
    %c0_14 = arith.constant 0 : index
    %15 = vector.load %arg7[%c0_12, %c0_13, %c0_14] : memref<1x1x128xf32, #tpu.memory_space<vmem>>, vector<1x1x128xf32>
    %16 = vector.shape_cast %15 : vector<1x1x128xf32> to vector<1x128xf32>
    %17 = vector.broadcast %16 : vector<1x128xf32> to vector<8x128xf32>
    %18 = arith.addf %14, %17 : vector<8x128xf32>
    %c0_15 = arith.constant 0 : index
    %c0_16 = arith.constant 0 : index
    %c0_17 = arith.constant 0 : index
    %19 = vector.load %arg8[%c0_15, %c0_16, %c0_17] : memref<1x128x128xbf16, #tpu.memory_space<vmem>>, vector<1x128x128xbf16>
    %20 = vector.shape_cast %19 : vector<1x128x128xbf16> to vector<128x128xbf16>
    %cst_18 = arith.constant dense<0.000000e+00> : vector<8x128xf32>
    %21 = tpu.matmul %4, %20, %cst_18 {dimension_numbers = #tpu.dot_dimension_numbers<[1], [0], [0], [1], [0, 0, 1, 1], [], []>} : vector<8x128xbf16>, vector<128x128xbf16>, vector<8x128xf32> -> vector<8x128xf32>
    %c0_19 = arith.constant 0 : index
    %c0_20 = arith.constant 0 : index
    %c0_21 = arith.constant 0 : index
    %22 = vector.load %arg9[%c0_19, %c0_20, %c0_21] : memref<1x1x128xf32, #tpu.memory_space<vmem>>, vector<1x1x128xf32>
    %23 = vector.shape_cast %22 : vector<1x1x128xf32> to vector<1x128xf32>
    %24 = vector.broadcast %23 : vector<1x128xf32> to vector<8x128xf32>
    %25 = arith.addf %21, %24 : vector<8x128xf32>
    %26 = vector.shape_cast %11 : vector<8x128xf32> to vector<8x4x32xf32>
    %27 = tpu.transpose %26, [1, 0, 2] : vector<8x4x32xf32> -> vector<4x8x32xf32>
    %28 = arith.truncf %27 : vector<4x8x32xf32> to vector<4x8x32xbf16>
    %29 = vector.shape_cast %18 : vector<8x128xf32> to vector<8x4x32xf32>
    %30 = tpu.transpose %29, [1, 0, 2] : vector<8x4x32xf32> -> vector<4x8x32xf32>
    %31 = arith.truncf %30 : vector<4x8x32xf32> to vector<4x8x32xbf16>
    %32 = vector.shape_cast %25 : vector<8x128xf32> to vector<8x4x32xf32>
    %33 = tpu.transpose %32, [1, 0, 2] : vector<8x4x32xf32> -> vector<4x8x32xf32>
    %34 = arith.truncf %33 : vector<4x8x32xf32> to vector<4x8x32xbf16>
    %c0_22 = arith.constant 0 : index
    %c0_23 = arith.constant 0 : index
    %c0_24 = arith.constant 0 : index
    %35 = vector.load %arg3[%c0_22, %c0_23, %c0_24] : memref<1x1x8xi32, #tpu.memory_space<vmem>>, vector<1x1x8xi32>
    %36 = vector.shape_cast %35 : vector<1x1x8xi32> to vector<1x8xi32>
    %c0_i32_25 = arith.constant 0 : i32
    %37 = vector.broadcast %c0_i32_25 : i32 to vector<1x8xi32>
    %38 = arith.cmpi eq, %36, %37 : vector<1x8xi32>
    %cst_26 = arith.constant -1.000000e+09 : f32
    %cst_27 = arith.constant 0.000000e+00 : f32
    %39 = vector.broadcast %cst_26 : f32 to vector<1x8xf32>
    %40 = vector.broadcast %cst_27 : f32 to vector<1x8xf32>
    %41 = arith.select %38, %39, %40 : vector<1x8xi1>, vector<1x8xf32>
    "tpu.trace_start"() <{level = 10 : i32, message = "hqd,hkd->hqk"}> : () -> ()
    %cst_28 = arith.constant dense<0.000000e+00> : vector<4x8x8xf32>
    %42 = tpu.matmul %28, %31, %cst_28 {dimension_numbers = #tpu.dot_dimension_numbers<[2], [2], [1], [1], [0, 0, 0, 1, 1, 1], [0], [0]>} : vector<4x8x32xbf16>, vector<4x8x32xbf16>, vector<4x8x8xf32> -> vector<4x8x8xf32>
    "tpu.trace_stop"() : () -> ()
    %cst_29 = arith.constant 0.353553385 : f32
    %43 = vector.broadcast %cst_29 : f32 to vector<4x8x8xf32>
    %44 = arith.mulf %42, %43 : vector<4x8x8xf32>
    %45 = vector.shape_cast %41 : vector<1x8xf32> to vector<1x1x8xf32>
    %46 = vector.broadcast %45 : vector<1x1x8xf32> to vector<4x8x8xf32>
    %47 = arith.addf %44, %46 : vector<4x8x8xf32>
    %cst_30 = arith.constant dense<0xFF800000> : vector<4x8xf32>
    %48 = vector.multi_reduction <maximumf>, %47, %cst_30 [2] : vector<4x8x8xf32> to vector<4x8xf32>
    %49 = vector.shape_cast %48 : vector<4x8xf32> to vector<4x8x1xf32>
    %50 = vector.broadcast %49 : vector<4x8x1xf32> to vector<4x8x8xf32>
    %51 = arith.subf %47, %50 : vector<4x8x8xf32>
    %52 = math.exp %51 : vector<4x8x8xf32>
    %cst_31 = arith.constant dense<0.000000e+00> : vector<4x8xf32>
    %53 = vector.multi_reduction <add>, %52, %cst_31 [2] : vector<4x8x8xf32> to vector<4x8xf32>
    %54 = vector.shape_cast %53 : vector<4x8xf32> to vector<4x8x1xf32>
    %55 = tpu.reciprocal %54 {approx = true} : vector<4x8x1xf32> -> vector<4x8x1xf32>
    %56 = vector.broadcast %55 : vector<4x8x1xf32> to vector<4x8x8xf32>
    %57 = arith.mulf %52, %56 : vector<4x8x8xf32>
    %58 = arith.truncf %57 : vector<4x8x8xf32> to vector<4x8x8xbf16>
    "tpu.trace_start"() <{level = 10 : i32, message = "hqk,hkd->hqd"}> : () -> ()
    %cst_32 = arith.constant dense<0.000000e+00> : vector<4x8x32xf32>
    %59 = tpu.matmul %58, %34, %cst_32 {dimension_numbers = #tpu.dot_dimension_numbers<[2], [1], [1], [2], [0, 0, 0, 1, 1, 2], [0], [0]>} : vector<4x8x8xbf16>, vector<4x8x32xbf16>, vector<4x8x32xf32> -> vector<4x8x32xf32>
    "tpu.trace_stop"() : () -> ()
    %60 = tpu.transpose %59, [1, 0, 2] : vector<4x8x32xf32> -> vector<8x4x32xf32>
    %61 = vector.shape_cast %60 : vector<8x4x32xf32> to vector<8x128xf32>
    %62 = arith.truncf %61 : vector<8x128xf32> to vector<8x128xbf16>
    %c0_33 = arith.constant 0 : index
    %c0_34 = arith.constant 0 : index
    %c0_35 = arith.constant 0 : index
    %63 = vector.load %arg10[%c0_33, %c0_34, %c0_35] : memref<1x128x128xbf16, #tpu.memory_space<vmem>>, vector<1x128x128xbf16>
    %64 = vector.shape_cast %63 : vector<1x128x128xbf16> to vector<128x128xbf16>
    %cst_36 = arith.constant dense<0.000000e+00> : vector<8x128xf32>
    %65 = tpu.matmul %62, %64, %cst_36 {dimension_numbers = #tpu.dot_dimension_numbers<[1], [0], [0], [1], [0, 0, 1, 1], [], []>} : vector<8x128xbf16>, vector<128x128xbf16>, vector<8x128xf32> -> vector<8x128xf32>
    %c0_37 = arith.constant 0 : index
    %c0_38 = arith.constant 0 : index
    %c0_39 = arith.constant 0 : index
    %66 = vector.load %arg11[%c0_37, %c0_38, %c0_39] : memref<1x1x128xf32, #tpu.memory_space<vmem>>, vector<1x1x128xf32>
    %67 = vector.shape_cast %66 : vector<1x1x128xf32> to vector<1x128xf32>
    %68 = vector.broadcast %67 : vector<1x128xf32> to vector<8x128xf32>
    %69 = arith.addf %65, %68 : vector<8x128xf32>
    %70 = arith.addf %69, %3 : vector<8x128xf32>
    %c0_40 = arith.constant 0 : index
    %c0_41 = arith.constant 0 : index
    %c0_42 = arith.constant 0 : index
    %71 = vector.load %arg12[%c0_40, %c0_41, %c0_42] : memref<1x1x128xf32, #tpu.memory_space<vmem>>, vector<1x1x128xf32>
    %72 = vector.shape_cast %71 : vector<1x1x128xf32> to vector<1x128xf32>
    %c0_43 = arith.constant 0 : index
    %c0_44 = arith.constant 0 : index
    %c0_45 = arith.constant 0 : index
    %73 = vector.load %arg13[%c0_43, %c0_44, %c0_45] : memref<1x1x128xf32, #tpu.memory_space<vmem>>, vector<1x1x128xf32>
    %74 = vector.shape_cast %73 : vector<1x1x128xf32> to vector<1x128xf32>
    %cst_46 = arith.constant dense<0.000000e+00> : vector<8xf32>
    %75 = vector.multi_reduction <add>, %70, %cst_46 [1] : vector<8x128xf32> to vector<8xf32>
    %76 = vector.shape_cast %75 : vector<8xf32> to vector<8x1xf32>
    %cst_47 = arith.constant 3.125000e-02 : f32
    %77 = vector.broadcast %cst_47 : f32 to vector<8x1xf32>
    %78 = arith.mulf %76, %77 : vector<8x1xf32>
    %79 = arith.mulf %70, %70 : vector<8x128xf32>
    %cst_48 = arith.constant dense<0.000000e+00> : vector<8xf32>
    %80 = vector.multi_reduction <add>, %79, %cst_48 [1] : vector<8x128xf32> to vector<8xf32>
    %81 = vector.shape_cast %80 : vector<8xf32> to vector<8x1xf32>
    %cst_49 = arith.constant 3.125000e-02 : f32
    %82 = vector.broadcast %cst_49 : f32 to vector<8x1xf32>
    %83 = arith.mulf %81, %82 : vector<8x1xf32>
    %84 = arith.mulf %78, %78 : vector<8x1xf32>
    %85 = arith.subf %83, %84 : vector<8x1xf32>
    %86 = vector.broadcast %78 : vector<8x1xf32> to vector<8x128xf32>
    %87 = arith.subf %70, %86 : vector<8x128xf32>
    %cst_50 = arith.constant 9.99999974E-6 : f32
    %88 = vector.broadcast %cst_50 : f32 to vector<8x1xf32>
    %89 = arith.addf %85, %88 : vector<8x1xf32>
    %90 = math.rsqrt %89 : vector<8x1xf32>
    %91 = vector.broadcast %90 : vector<8x1xf32> to vector<8x128xf32>
    %92 = arith.mulf %87, %91 : vector<8x128xf32>
    %93 = vector.broadcast %72 : vector<1x128xf32> to vector<8x128xf32>
    %94 = arith.mulf %92, %93 : vector<8x128xf32>
    %95 = vector.broadcast %74 : vector<1x128xf32> to vector<8x128xf32>
    %96 = arith.addf %94, %95 : vector<8x128xf32>
    %97 = arith.truncf %96 : vector<8x128xf32> to vector<8x128xbf16>
    %c0_51 = arith.constant 0 : index
    %c0_52 = arith.constant 0 : index
    %c0_53 = arith.constant 0 : index
    %98 = vector.load %arg14[%c0_51, %c0_52, %c0_53] : memref<1x128x128xbf16, #tpu.memory_space<vmem>>, vector<1x128x128xbf16>
    %99 = vector.shape_cast %98 : vector<1x128x128xbf16> to vector<128x128xbf16>
    %cst_54 = arith.constant dense<0.000000e+00> : vector<8x128xf32>
    %100 = tpu.matmul %97, %99, %cst_54 {dimension_numbers = #tpu.dot_dimension_numbers<[1], [0], [0], [1], [0, 0, 1, 1], [], []>} : vector<8x128xbf16>, vector<128x128xbf16>, vector<8x128xf32> -> vector<8x128xf32>
    %c0_55 = arith.constant 0 : index
    %c0_56 = arith.constant 0 : index
    %c0_57 = arith.constant 0 : index
    %101 = vector.load %arg15[%c0_55, %c0_56, %c0_57] : memref<1x1x128xf32, #tpu.memory_space<vmem>>, vector<1x1x128xf32>
    %102 = vector.shape_cast %101 : vector<1x1x128xf32> to vector<1x128xf32>
    %103 = vector.broadcast %102 : vector<1x128xf32> to vector<8x128xf32>
    %104 = arith.addf %100, %103 : vector<8x128xf32>
    %cst_58 = arith.constant 0.000000e+00 : f32
    %105 = vector.broadcast %cst_58 : f32 to vector<8x128xf32>
    %106 = arith.maximumf %104, %105 : vector<8x128xf32>
    %107 = arith.truncf %106 : vector<8x128xf32> to vector<8x128xbf16>
    %c0_59 = arith.constant 0 : index
    %c0_60 = arith.constant 0 : index
    %c0_61 = arith.constant 0 : index
    %108 = vector.load %arg16[%c0_59, %c0_60, %c0_61] : memref<1x128x128xbf16, #tpu.memory_space<vmem>>, vector<1x128x128xbf16>
    %109 = vector.shape_cast %108 : vector<1x128x128xbf16> to vector<128x128xbf16>
    %cst_62 = arith.constant dense<0.000000e+00> : vector<8x128xf32>
    %110 = tpu.matmul %107, %109, %cst_62 {dimension_numbers = #tpu.dot_dimension_numbers<[1], [0], [0], [1], [0, 0, 1, 1], [], []>} : vector<8x128xbf16>, vector<128x128xbf16>, vector<8x128xf32> -> vector<8x128xf32>
    %c0_63 = arith.constant 0 : index
    %c0_64 = arith.constant 0 : index
    %c0_65 = arith.constant 0 : index
    %111 = vector.load %arg17[%c0_63, %c0_64, %c0_65] : memref<1x1x128xf32, #tpu.memory_space<vmem>>, vector<1x1x128xf32>
    %112 = vector.shape_cast %111 : vector<1x1x128xf32> to vector<1x128xf32>
    %113 = vector.broadcast %112 : vector<1x128xf32> to vector<8x128xf32>
    %114 = arith.addf %110, %113 : vector<8x128xf32>
    %115 = arith.addf %114, %96 : vector<8x128xf32>
    %c0_66 = arith.constant 0 : index
    %c0_67 = arith.constant 0 : index
    %c0_68 = arith.constant 0 : index
    %116 = vector.load %arg18[%c0_66, %c0_67, %c0_68] : memref<1x1x128xf32, #tpu.memory_space<vmem>>, vector<1x1x128xf32>
    %117 = vector.shape_cast %116 : vector<1x1x128xf32> to vector<1x128xf32>
    %c0_69 = arith.constant 0 : index
    %c0_70 = arith.constant 0 : index
    %c0_71 = arith.constant 0 : index
    %118 = vector.load %arg19[%c0_69, %c0_70, %c0_71] : memref<1x1x128xf32, #tpu.memory_space<vmem>>, vector<1x1x128xf32>
    %119 = vector.shape_cast %118 : vector<1x1x128xf32> to vector<1x128xf32>
    %cst_72 = arith.constant dense<0.000000e+00> : vector<8xf32>
    %120 = vector.multi_reduction <add>, %115, %cst_72 [1] : vector<8x128xf32> to vector<8xf32>
    %121 = vector.shape_cast %120 : vector<8xf32> to vector<8x1xf32>
    %cst_73 = arith.constant 3.125000e-02 : f32
    %122 = vector.broadcast %cst_73 : f32 to vector<8x1xf32>
    %123 = arith.mulf %121, %122 : vector<8x1xf32>
    %124 = arith.mulf %115, %115 : vector<8x128xf32>
    %cst_74 = arith.constant dense<0.000000e+00> : vector<8xf32>
    %125 = vector.multi_reduction <add>, %124, %cst_74 [1] : vector<8x128xf32> to vector<8xf32>
    %126 = vector.shape_cast %125 : vector<8xf32> to vector<8x1xf32>
    %cst_75 = arith.constant 3.125000e-02 : f32
    %127 = vector.broadcast %cst_75 : f32 to vector<8x1xf32>
    %128 = arith.mulf %126, %127 : vector<8x1xf32>
    %129 = arith.mulf %123, %123 : vector<8x1xf32>
    %130 = arith.subf %128, %129 : vector<8x1xf32>
    %131 = vector.broadcast %123 : vector<8x1xf32> to vector<8x128xf32>
    %132 = arith.subf %115, %131 : vector<8x128xf32>
    %cst_76 = arith.constant 9.99999974E-6 : f32
    %133 = vector.broadcast %cst_76 : f32 to vector<8x1xf32>
    %134 = arith.addf %130, %133 : vector<8x1xf32>
    %135 = math.rsqrt %134 : vector<8x1xf32>
    %136 = vector.broadcast %135 : vector<8x1xf32> to vector<8x128xf32>
    %137 = arith.mulf %132, %136 : vector<8x128xf32>
    %138 = vector.broadcast %117 : vector<1x128xf32> to vector<8x128xf32>
    %139 = arith.mulf %137, %138 : vector<8x128xf32>
    %140 = vector.broadcast %119 : vector<1x128xf32> to vector<8x128xf32>
    %141 = arith.addf %139, %140 : vector<8x128xf32>
    %c0_77 = arith.constant 0 : index
    %c0_78 = arith.constant 0 : index
    %142 = vector.load %arg20[%c0_77, %c0_78] : memref<8x128xf32, #tpu.memory_space<vmem>>, vector<8x128xf32>
    tpu.vector_store %arg20[%c0_77, %c0_78], %141 {strides = array<i32>} : memref<8x128xf32, #tpu.memory_space<vmem>>, vector<8x128xf32>,
    return
  }
  func.func @transform_0(%arg0: i32, %arg1: i32) -> (i32, i32) {
    %c0_i32 = arith.constant 0 : i32
    %c0_i32_0 = arith.constant 0 : i32
    return %arg0, %c0_i32 : i32, i32
  }
  func.func @transform_1(%arg0: i32, %arg1: i32) -> (i32, i32, i32) {
    %c0_i32 = arith.constant 0 : i32
    %c0_i32_0 = arith.constant 0 : i32
    %c0_i32_1 = arith.constant 0 : i32
    return %arg0, %c0_i32, %c0_i32_0 : i32, i32, i32
  }
  func.func @transform_2(%arg0: i32, %arg1: i32) -> (i32, i32, i32) {
    %c0_i32 = arith.constant 0 : i32
    %c0_i32_0 = arith.constant 0 : i32
    %c0_i32_1 = arith.constant 0 : i32
    return %arg1, %c0_i32, %c0_i32_0 : i32, i32, i32
  }
  func.func @transform_3(%arg0: i32, %arg1: i32) -> (i32, i32, i32) {
    %c0_i32 = arith.constant 0 : i32
    %c0_i32_0 = arith.constant 0 : i32
    %c0_i32_1 = arith.constant 0 : i32
    return %arg1, %c0_i32, %c0_i32_0 : i32, i32, i32
  }
  func.func @transform_4(%arg0: i32, %arg1: i32) -> (i32, i32, i32) {
    %c0_i32 = arith.constant 0 : i32
    %c0_i32_0 = arith.constant 0 : i32
    %c0_i32_1 = arith.constant 0 : i32
    return %arg1, %c0_i32, %c0_i32_0 : i32, i32, i32
  }
  func.func @transform_5(%arg0: i32, %arg1: i32) -> (i32, i32, i32) {
    %c0_i32 = arith.constant 0 : i32
    %c0_i32_0 = arith.constant 0 : i32
    %c0_i32_1 = arith.constant 0 : i32
    return %arg1, %c0_i32, %c0_i32_0 : i32, i32, i32
  }
  func.func @transform_6(%arg0: i32, %arg1: i32) -> (i32, i32, i32) {
    %c0_i32 = arith.constant 0 : i32
    %c0_i32_0 = arith.constant 0 : i32
    %c0_i32_1 = arith.constant 0 : i32
    return %arg1, %c0_i32, %c0_i32_0 : i32, i32, i32
  }
  func.func @transform_7(%arg0: i32, %arg1: i32) -> (i32, i32, i32) {
    %c0_i32 = arith.constant 0 : i32
    %c0_i32_0 = arith.constant 0 : i32
    %c0_i32_1 = arith.constant 0 : i32
    return %arg1, %c0_i32, %c0_i32_0 : i32, i32, i32
  }
  func.func @transform_8(%arg0: i32, %arg1: i32) -> (i32, i32, i32) {
    %c0_i32 = arith.constant 0 : i32
    %c0_i32_0 = arith.constant 0 : i32
    %c0_i32_1 = arith.constant 0 : i32
    return %arg1, %c0_i32, %c0_i32_0 : i32, i32, i32
  }
  func.func @transform_9(%arg0: i32, %arg1: i32) -> (i32, i32, i32) {
    %c0_i32 = arith.constant 0 : i32
    %c0_i32_0 = arith.constant 0 : i32
    %c0_i32_1 = arith.constant 0 : i32
    return %arg1, %c0_i32, %c0_i32_0 : i32, i32, i32
  }
  func.func @transform_10(%arg0: i32, %arg1: i32) -> (i32, i32, i32) {
    %c0_i32 = arith.constant 0 : i32
    %c0_i32_0 = arith.constant 0 : i32
    %c0_i32_1 = arith.constant 0 : i32
    return %arg1, %c0_i32, %c0_i32_0 : i32, i32, i32
  }
  func.func @transform_11(%arg0: i32, %arg1: i32) -> (i32, i32, i32) {
    %c0_i32 = arith.constant 0 : i32
    %c0_i32_0 = arith.constant 0 : i32
    %c0_i32_1 = arith.constant 0 : i32
    return %arg1, %c0_i32, %c0_i32_0 : i32, i32, i32
  }
  func.func @transform_12(%arg0: i32, %arg1: i32) -> (i32, i32, i32) {
    %c0_i32 = arith.constant 0 : i32
    %c0_i32_0 = arith.constant 0 : i32
    %c0_i32_1 = arith.constant 0 : i32
    return %arg1, %c0_i32, %c0_i32_0 : i32, i32, i32
  }
  func.func @transform_13(%arg0: i32, %arg1: i32) -> (i32, i32, i32) {
    %c0_i32 = arith.constant 0 : i32
    %c0_i32_0 = arith.constant 0 : i32
    %c0_i32_1 = arith.constant 0 : i32
    return %arg1, %c0_i32, %c0_i32_0 : i32, i32, i32
  }
  func.func @transform_14(%arg0: i32, %arg1: i32) -> (i32, i32, i32) {
    %c0_i32 = arith.constant 0 : i32
    %c0_i32_0 = arith.constant 0 : i32
    %c0_i32_1 = arith.constant 0 : i32
    return %arg1, %c0_i32, %c0_i32_0 : i32, i32, i32
  }
  func.func @transform_15(%arg0: i32, %arg1: i32) -> (i32, i32, i32) {
    %c0_i32 = arith.constant 0 : i32
    %c0_i32_0 = arith.constant 0 : i32
    %c0_i32_1 = arith.constant 0 : i32
    return %arg1, %c0_i32, %c0_i32_0 : i32, i32, i32
  }
  func.func @transform_16(%arg0: i32, %arg1: i32) -> (i32, i32, i32) {
    %c0_i32 = arith.constant 0 : i32
    %c0_i32_0 = arith.constant 0 : i32
    %c0_i32_1 = arith.constant 0 : i32
    return %arg1, %c0_i32, %c0_i32_0 : i32, i32, i32
  }
  func.func @transform_17(%arg0: i32, %arg1: i32) -> (i32, i32, i32) {
    %c0_i32 = arith.constant 0 : i32
    %c0_i32_0 = arith.constant 0 : i32
    %c0_i32_1 = arith.constant 0 : i32
    return %arg1, %c0_i32, %c0_i32_0 : i32, i32, i32
  }
  func.func @transform_18(%arg0: i32, %arg1: i32) -> (i32, i32) {
    %c0_i32 = arith.constant 0 : i32
    %c0_i32_0 = arith.constant 0 : i32
    return %arg0, %c0_i32 : i32, i32
  }
}

</mosaic_0001>

<llo_original>
// kernel: tpu_custom_call.1
$region0: #{tpu_custom_call.1}
  #allocation0 [shape = 'u32[]', space=smem, size = 0x4, offset = 0x4, fixed_abs, tag = 'smem constant byte address 0x4 - core index']
  #allocation1 [shape = 'u32[144,128]{1,0:T(1,128)}', space=vmem, size = 0x12000, scoped, tag = 'internal scratch']
  %s0 = inlined_call_operand.hbm [shape: f32[16,128], index: 0, kind: input, shape index: {}]
  %s1 = inlined_call_operand.vmem [shape: s32[2,1,8], index: 1, kind: input, shape index: {}]
  %s2 = inlined_call_operand.hbm [shape: bf16[2,128,128], index: 2, kind: input, shape index: {}]
  %s3 = inlined_call_operand.vmem [shape: f32[2,1,128], index: 3, kind: input, shape index: {}]
  %s4 = inlined_call_operand.hbm [shape: bf16[2,128,128], index: 4, kind: input, shape index: {}]
  %s5 = inlined_call_operand.vmem [shape: f32[2,1,128], index: 5, kind: input, shape index: {}]
  %s6 = inlined_call_operand.hbm [shape: bf16[2,128,128], index: 6, kind: input, shape index: {}]
  %s7 = inlined_call_operand.vmem [shape: f32[2,1,128], index: 7, kind: input, shape index: {}]
  %s8 = inlined_call_operand.hbm [shape: bf16[2,128,128], index: 8, kind: input, shape index: {}]
  %s9 = inlined_call_operand.vmem [shape: f32[2,1,128], index: 9, kind: input, shape index: {}]
  %s10 = inlined_call_operand.vmem [shape: f32[2,1,128], index: 10, kind: input, shape index: {}]
  %s11 = inlined_call_operand.vmem [shape: f32[2,1,128], index: 11, kind: input, shape index: {}]
  %s12 = inlined_call_operand.hbm [shape: bf16[2,128,128], index: 12, kind: input, shape index: {}]
  %s13 = inlined_call_operand.vmem [shape: f32[2,1,128], index: 13, kind: input, shape index: {}]
  %s14 = inlined_call_operand.hbm [shape: bf16[2,128,128], index: 14, kind: input, shape index: {}]
  %s15 = inlined_call_operand.vmem [shape: f32[2,1,128], index: 15, kind: input, shape index: {}]
  %s16 = inlined_call_operand.vmem [shape: f32[2,1,128], index: 16, kind: input, shape index: {}]
  %s17 = inlined_call_operand.vmem [shape: f32[2,1,128], index: 17, kind: input, shape index: {}]
  %s18 = inlined_call_operand.hbm [shape: f32[16,128], index: 18, kind: output, shape index: {}]
  %s19 = sld [smem:[#allocation0]]
  $region137: #{tpu_custom_call.1} parent=0
    _
  %s21 = ssub.s32 1, %s19
  %s22 = scalar_select 0, %s21, %s19
  $region1: #{tpu_custom_call.1} parent=0
    #allocation2 [shape = 'u8[8192]{0}', space=vmem, size = 0x2000, scoped, tag = 'input window, operand 0']
    #allocation3 [shape = 's32[2]{0}', space=sflag, size = 0x8, scoped, tag = 'scoped memory for tpu_custom_call.1']
    #allocation4 [shape = 's32[2]{0}', space=sflag, size = 0x8, scoped, tag = 'scoped memory for tpu_custom_call.1']
    #allocation5 [shape = 'u8[65536]{0}', space=vmem, size = 0x10000, scoped, tag = 'input window, operand 2']
    #allocation6 [shape = 's32[2]{0}', space=sflag, size = 0x8, scoped, tag = 'scoped memory for tpu_custom_call.1']
    #allocation7 [shape = 'u8[65536]{0}', space=vmem, size = 0x10000, scoped, tag = 'input window, operand 4']
    #allocation8 [shape = 'u8[65536]{0}', space=vmem, size = 0x10000, scoped, tag = 'input window, operand 6']
    #allocation9 [shape = 's32[2]{0}', space=sflag, size = 0x8, scoped, tag = 'scoped memory for tpu_custom_call.1']
    #allocation10 [shape = 'u8[65536]{0}', space=vmem, size = 0x10000, scoped, tag = 'input window, operand 8']
    #allocation11 [shape = 'u8[65536]{0}', space=vmem, size = 0x10000, scoped, tag = 'input window, operand 12']
    #allocation12 [shape = 's32[2]{0}', space=sflag, size = 0x8, scoped, tag = 'scoped memory for tpu_custom_call.1']
    #allocation13 [shape = 'u8[65536]{0}', space=vmem, size = 0x10000, scoped, tag = 'input window, operand 14']
    #allocation14 [shape = 'u8[8192]{0}', space=vmem, size = 0x2000, scoped, tag = 'output window, operand 0']
    %23 = vsyncpa [#allocation3], 0
    %s24 = scalar_lea.sflag [#allocation3], 1
    %25 = vsyncpa %s24, 0
    %26 = vsyncpa [#allocation6], 0
    %s27 = scalar_lea.sflag [#allocation6], 1
    %28 = vsyncpa %s27, 0
    %29 = vsyncpa [#allocation9], 0
    %s30 = scalar_lea.sflag [#allocation9], 1
    %31 = vsyncpa %s30, 0
    %32 = vsyncpa [#allocation12], 0
    %s33 = scalar_lea.sflag [#allocation12], 1
    %34 = vsyncpa %s33, 0
    %35 = vsyncpa [#allocation4], 0
    %s36 = scalar_lea.sflag [#allocation4], 1
    %37 = vsyncpa %s36, 0
    loop: start=0, step=1, limit=6
    $region2: #{tpu_custom_call.1} parent=1 // loop_pre_header
      _
    $region3: #{tpu_custom_call.1} parent=1 // loop_header
      %s39 = sphi 0, %s43
      %p40 = scmp.ge.s32.totalorder %s39, 6
      %s46 = sphi 0, %s58
      %s47 = sphi 0, %s54
      %s48 = sphi 0, %s46
      %s49 = sphi 0, %s47
      %s50 = sphi 0, %s48
      %s51 = sphi 0, %s49
      %s61 = sphi 0, %s63
      %s64 = sphi 0, %s61
      %s65 = sphi 0, %s64
      %s81 = sphi 0, %s65
      %s87 = sphi 0, %s89
      %s90 = sphi 0, %s87
      %s91 = sphi 0, %s90
      %s107 = sphi 0, %s91
      %s113 = sphi 0, %s115
      %s116 = sphi 0, %s113
      %s117 = sphi 0, %s116
      %s133 = sphi 0, %s117
      %s139 = sphi 0, %s141
      %s142 = sphi 0, %s139
      %s143 = sphi 0, %s142
      %s159 = sphi 0, %s143
      %s165 = sphi 0, %s167
      %s168 = sphi 0, %s165
      %s169 = sphi 0, %s168
      %s185 = sphi 0, %s169
      %s191 = sphi 0, %s193
      %s194 = sphi 0, %s191
      %s195 = sphi 0, %s194
      %s211 = sphi 0, %s195
      %s217 = sphi 0, %s219
      %s220 = sphi 0, %s217
      %s221 = sphi 0, %s220
      %s237 = sphi 0, %s221
      %s243 = sphi 0, %s245
      %s246 = sphi 0, %s243
      %s247 = sphi 0, %s246
      %s263 = sphi 0, %s247
      %s269 = sphi 0, %s271
      %s272 = sphi 0, %s269
      %s273 = sphi 0, %s272
      %s289 = sphi 0, %s273
      %s295 = sphi 0, %s297
      %s298 = sphi 0, %s295
      %s299 = sphi 0, %s298
      %s315 = sphi 0, %s299
      %s321 = sphi 0, %s323
      %s324 = sphi 0, %s321
      %s325 = sphi 0, %s324
      %s341 = sphi 0, %s325
      %s347 = sphi 0, %s349
      %s350 = sphi 0, %s347
      %s351 = sphi 0, %s350
      %s367 = sphi 0, %s351
      %s373 = sphi 0, %s375
      %s376 = sphi 0, %s373
      %s377 = sphi 0, %s376
      %s393 = sphi 0, %s377
      %s399 = sphi 0, %s401
      %s402 = sphi 0, %s399
      %s403 = sphi 0, %s402
      %s419 = sphi 0, %s403
      %s425 = sphi 0, %s427
      %s428 = sphi 0, %s425
      %s429 = sphi 0, %s428
      %s445 = sphi 0, %s429
      %s451 = sphi 0, %s453
      %s454 = sphi 0, %s451
      %s455 = sphi 0, %s454
      %s471 = sphi 0, %s455
      %s477 = sphi 0, %s479
      %s480 = sphi 0, %s477
      %s481 = sphi 0, %s480
      %s497 = sphi 0, %s481
      %s503 = sphi 0, %s505
      %s506 = sphi 0, %s503
      %s507 = sphi 0, %s506
      %s523 = sphi 0, %s507
      %s529 = sphi 0, %s531
      %s532 = sphi 0, %s529
      %s533 = sphi 0, %s532
      %s549 = sphi 0, %s533
    $region4: #{tpu_custom_call.1} parent=1 // loop_header_branch
      %42 = sbr.rel (%p40) target = $region8
    $region5: #{tpu_custom_call.1} parent=1 // loop_body
      %s44 = ssub.s32 %s39, 1
      %s45 = ssub.s32 %s39, 2
      %s52 = sadd.s32 1, %s47
      %p53 = scmp.ge.s32.totalorder %s52, 2
      %s54 = scalar_select %p53, 0, %s52
      %s55 = sadd.s32 1, %s46
      %s56 = scalar_select %p53, %s55, %s46
      %p57 = scmp.ge.s32.totalorder %s56, 2
      %s58 = scalar_select %p57, 0, %s56
      %s59 = ssub.s32 %s46, %s58
      %p60 = scmp.eq.s32.totalorder %s59, 0
      %s62 = sadd.s32 %s61, 1
      %s63 = scalar_select %p60, %s61, %s62
      %p66 = pneg %p60
      %p67 = scmp.eq.s32.totalorder %s39, 3
      %p68 = por %p66, %p67
      %p69 = scmp.ne.s32.totalorder %s61, %s64
      %p70 = scmp.eq.s32.totalorder %s39, 0
      %p71 = por %p69, %p70
      %p72 = scmp.ne.s32.totalorder %s61, %s64
      %p73 = scmp.eq.s32.totalorder %s44, 3
      %p74 = por %p72, %p73
      %p75 = scmp.ne.s32.totalorder %s64, %s65
      %p76 = scmp.eq.s32.totalorder %s44, 0
      %p77 = por %p75, %p76
      %p78 = scmp.ne.s32.totalorder %s64, %s65
      %p79 = scmp.eq.s32.totalorder %s45, 3
      %p80 = por %p78, %p79
      %p82 = scmp.ne.s32.totalorder %s65, %s81
      %p83 = scmp.eq.s32.totalorder %s45, 0
      %p84 = por %p82, %p83
      %s85 = ssub.s32 %s46, %s58
      %p86 = scmp.eq.s32.totalorder %s85, 0
      %s88 = sadd.s32 %s87, 1
      %s89 = scalar_select %p86, %s87, %s88
      %p92 = pneg %p86
      %p93 = scmp.eq.s32.totalorder %s39, 3
      %p94 = por %p92, %p93
      %p95 = scmp.ne.s32.totalorder %s87, %s90
      %p96 = scmp.eq.s32.totalorder %s39, 0
      %p97 = por %p95, %p96
      %p98 = scmp.ne.s32.totalorder %s87, %s90
      %p99 = scmp.eq.s32.totalorder %s44, 3
      %p100 = por %p98, %p99
      %p101 = scmp.ne.s32.totalorder %s90, %s91
      %p102 = scmp.eq.s32.totalorder %s44, 0
      %p103 = por %p101, %p102
      %p104 = scmp.ne.s32.totalorder %s90, %s91
      %p105 = scmp.eq.s32.totalorder %s45, 3
      %p106 = por %p104, %p105
      %p108 = scmp.ne.s32.totalorder %s91, %s107
      %p109 = scmp.eq.s32.totalorder %s45, 0
      %p110 = por %p108, %p109
      %s111 = ssub.s32 %s47, %s54
      %p112 = scmp.eq.s32.totalorder %s111, 0
      %s114 = sadd.s32 %s113, 1
      %s115 = scalar_select %p112, %s113, %s114
      %p118 = pneg %p112
      %p119 = scmp.eq.s32.totalorder %s39, 3
      %p120 = por %p118, %p119
      %p121 = scmp.ne.s32.totalorder %s113, %s116
      %p122 = scmp.eq.s32.totalorder %s39, 0
      %p123 = por %p121, %p122
      %p124 = scmp.ne.s32.totalorder %s113, %s116
      %p125 = scmp.eq.s32.totalorder %s44, 3
      %p126 = por %p124, %p125
      %p127 = scmp.ne.s32.totalorder %s116, %s117
      %p128 = scmp.eq.s32.totalorder %s44, 0
      %p129 = por %p127, %p128
      %p130 = scmp.ne.s32.totalorder %s116, %s117
      %p131 = scmp.eq.s32.totalorder %s45, 3
      %p132 = por %p130, %p131
      %p134 = scmp.ne.s32.totalorder %s117, %s133
      %p135 = scmp.eq.s32.totalorder %s45, 0
      %p136 = por %p134, %p135
      %s137 = ssub.s32 %s47, %s54
      %p138 = scmp.eq.s32.totalorder %s137, 0
      %s140 = sadd.s32 %s139, 1
      %s141 = scalar_select %p138, %s139, %s140
      %p144 = pneg %p138
      %p145 = scmp.eq.s32.totalorder %s39, 3
      %p146 = por %p144, %p145
      %p147 = scmp.ne.s32.totalorder %s139, %s142
      %p148 = scmp.eq.s32.totalorder %s39, 0
      %p149 = por %p147, %p148
      %p150 = scmp.ne.s32.totalorder %s139, %s142
      %p151 = scmp.eq.s32.totalorder %s44, 3
      %p152 = por %p150, %p151
      %p153 = scmp.ne.s32.totalorder %s142, %s143
      %p154 = scmp.eq.s32.totalorder %s44, 0
      %p155 = por %p153, %p154
      %p156 = scmp.ne.s32.totalorder %s142, %s143
      %p157 = scmp.eq.s32.totalorder %s45, 3
      %p158 = por %p156, %p157
      %p160 = scmp.ne.s32.totalorder %s143, %s159
      %p161 = scmp.eq.s32.totalorder %s45, 0
      %p162 = por %p160, %p161
      %s163 = ssub.s32 %s47, %s54
      %p164 = scmp.eq.s32.totalorder %s163, 0
      %s166 = sadd.s32 %s165, 1
      %s167 = scalar_select %p164, %s165, %s166
      %p170 = pneg %p164
      %p171 = scmp.eq.s32.totalorder %s39, 3
      %p172 = por %p170, %p171
      %p173 = scmp.ne.s32.totalorder %s165, %s168
      %p174 = scmp.eq.s32.totalorder %s39, 0
      %p175 = por %p173, %p174
      %p176 = scmp.ne.s32.totalorder %s165, %s168
      %p177 = scmp.eq.s32.totalorder %s44, 3
      %p178 = por %p176, %p177
      %p179 = scmp.ne.s32.totalorder %s168, %s169
      %p180 = scmp.eq.s32.totalorder %s44, 0
      %p181 = por %p179, %p180
      %p182 = scmp.ne.s32.totalorder %s168, %s169
      %p183 = scmp.eq.s32.totalorder %s45, 3
      %p184 = por %p182, %p183
      %p186 = scmp.ne.s32.totalorder %s169, %s185
      %p187 = scmp.eq.s32.totalorder %s45, 0
      %p188 = por %p186, %p187
      %s189 = ssub.s32 %s47, %s54
      %p190 = scmp.eq.s32.totalorder %s189, 0
      %s192 = sadd.s32 %s191, 1
      %s193 = scalar_select %p190, %s191, %s192
      %p196 = pneg %p190
      %p197 = scmp.eq.s32.totalorder %s39, 3
      %p198 = por %p196, %p197
      %p199 = scmp.ne.s32.totalorder %s191, %s194
      %p200 = scmp.eq.s32.totalorder %s39, 0
      %p201 = por %p199, %p200
      %p202 = scmp.ne.s32.totalorder %s191, %s194
      %p203 = scmp.eq.s32.totalorder %s44, 3
      %p204 = por %p202, %p203
      %p205 = scmp.ne.s32.totalorder %s194, %s195
      %p206 = scmp.eq.s32.totalorder %s44, 0
      %p207 = por %p205, %p206
      %p208 = scmp.ne.s32.totalorder %s194, %s195
      %p209 = scmp.eq.s32.totalorder %s45, 3
      %p210 = por %p208, %p209
      %p212 = scmp.ne.s32.totalorder %s195, %s211
      %p213 = scmp.eq.s32.totalorder %s45, 0
      %p214 = por %p212, %p213
      %s215 = ssub.s32 %s47, %s54
      %p216 = scmp.eq.s32.totalorder %s215, 0
      %s218 = sadd.s32 %s217, 1
      %s219 = scalar_select %p216, %s217, %s218
      %p222 = pneg %p216
      %p223 = scmp.eq.s32.totalorder %s39, 3
      %p224 = por %p222, %p223
      %p225 = scmp.ne.s32.totalorder %s217, %s220
      %p226 = scmp.eq.s32.totalorder %s39, 0
      %p227 = por %p225, %p226
      %p228 = scmp.ne.s32.totalorder %s217, %s220
      %p229 = scmp.eq.s32.totalorder %s44, 3
      %p230 = por %p228, %p229
      %p231 = scmp.ne.s32.totalorder %s220, %s221
      %p232 = scmp.eq.s32.totalorder %s44, 0
      %p233 = por %p231, %p232
      %p234 = scmp.ne.s32.totalorder %s220, %s221
      %p235 = scmp.eq.s32.totalorder %s45, 3
      %p236 = por %p234, %p235
      %p238 = scmp.ne.s32.totalorder %s221, %s237
      %p239 = scmp.eq.s32.totalorder %s45, 0
      %p240 = por %p238, %p239
      %s241 = ssub.s32 %s47, %s54
      %p242 = scmp.eq.s32.totalorder %s241, 0
      %s244 = sadd.s32 %s243, 1
      %s245 = scalar_select %p242, %s243, %s244
      %p248 = pneg %p242
      %p249 = scmp.eq.s32.totalorder %s39, 3
      %p250 = por %p248, %p249
      %p251 = scmp.ne.s32.totalorder %s243, %s246
      %p252 = scmp.eq.s32.totalorder %s39, 0
      %p253 = por %p251, %p252
      %p254 = scmp.ne.s32.totalorder %s243, %s246
      %p255 = scmp.eq.s32.totalorder %s44, 3
      %p256 = por %p254, %p255
      %p257 = scmp.ne.s32.totalorder %s246, %s247
      %p258 = scmp.eq.s32.totalorder %s44, 0
      %p259 = por %p257, %p258
      %p260 = scmp.ne.s32.totalorder %s246, %s247
      %p261 = scmp.eq.s32.totalorder %s45, 3
      %p262 = por %p260, %p261
      %p264 = scmp.ne.s32.totalorder %s247, %s263
      %p265 = scmp.eq.s32.totalorder %s45, 0
      %p266 = por %p264, %p265
      %s267 = ssub.s32 %s47, %s54
      %p268 = scmp.eq.s32.totalorder %s267, 0
      %s270 = sadd.s32 %s269, 1
      %s271 = scalar_select %p268, %s269, %s270
      %p274 = pneg %p268
      %p275 = scmp.eq.s32.totalorder %s39, 3
      %p276 = por %p274, %p275
      %p277 = scmp.ne.s32.totalorder %s269, %s272
      %p278 = scmp.eq.s32.totalorder %s39, 0
      %p279 = por %p277, %p278
      %p280 = scmp.ne.s32.totalorder %s269, %s272
      %p281 = scmp.eq.s32.totalorder %s44, 3
      %p282 = por %p280, %p281
      %p283 = scmp.ne.s32.totalorder %s272, %s273
      %p284 = scmp.eq.s32.totalorder %s44, 0
      %p285 = por %p283, %p284
      %p286 = scmp.ne.s32.totalorder %s272, %s273
      %p287 = scmp.eq.s32.totalorder %s45, 3
      %p288 = por %p286, %p287
      %p290 = scmp.ne.s32.totalorder %s273, %s289
      %p291 = scmp.eq.s32.totalorder %s45, 0
      %p292 = por %p290, %p291
      %s293 = ssub.s32 %s47, %s54
      %p294 = scmp.eq.s32.totalorder %s293, 0
      %s296 = sadd.s32 %s295, 1
      %s297 = scalar_select %p294, %s295, %s296
      %p300 = pneg %p294
      %p301 = scmp.eq.s32.totalorder %s39, 3
      %p302 = por %p300, %p301
      %p303 = scmp.ne.s32.totalorder %s295, %s298
      %p304 = scmp.eq.s32.totalorder %s39, 0
      %p305 = por %p303, %p304
      %p306 = scmp.ne.s32.totalorder %s295, %s298
      %p307 = scmp.eq.s32.totalorder %s44, 3
      %p308 = por %p306, %p307
      %p309 = scmp.ne.s32.totalorder %s298, %s299
      %p310 = scmp.eq.s32.totalorder %s44, 0
      %p311 = por %p309, %p310
      %p312 = scmp.ne.s32.totalorder %s298, %s299
      %p313 = scmp.eq.s32.totalorder %s45, 3
      %p314 = por %p312, %p313
      %p316 = scmp.ne.s32.totalorder %s299, %s315
      %p317 = scmp.eq.s32.totalorder %s45, 0
      %p318 = por %p316, %p317
      %s319 = ssub.s32 %s47, %s54
      %p320 = scmp.eq.s32.totalorder %s319, 0
      %s322 = sadd.s32 %s321, 1
      %s323 = scalar_select %p320, %s321, %s322
      %p326 = pneg %p320
      %p327 = scmp.eq.s32.totalorder %s39, 3
      %p328 = por %p326, %p327
      %p329 = scmp.ne.s32.totalorder %s321, %s324
      %p330 = scmp.eq.s32.totalorder %s39, 0
      %p331 = por %p329, %p330
      %p332 = scmp.ne.s32.totalorder %s321, %s324
      %p333 = scmp.eq.s32.totalorder %s44, 3
      %p334 = por %p332, %p333
      %p335 = scmp.ne.s32.totalorder %s324, %s325
      %p336 = scmp.eq.s32.totalorder %s44, 0
      %p337 = por %p335, %p336
      %p338 = scmp.ne.s32.totalorder %s324, %s325
      %p339 = scmp.eq.s32.totalorder %s45, 3
      %p340 = por %p338, %p339
      %p342 = scmp.ne.s32.totalorder %s325, %s341
      %p343 = scmp.eq.s32.totalorder %s45, 0
      %p344 = por %p342, %p343
      %s345 = ssub.s32 %s47, %s54
      %p346 = scmp.eq.s32.totalorder %s345, 0
      %s348 = sadd.s32 %s347, 1
      %s349 = scalar_select %p346, %s347, %s348
      %p352 = pneg %p346
      %p353 = scmp.eq.s32.totalorder %s39, 3
      %p354 = por %p352, %p353
      %p355 = scmp.ne.s32.totalorder %s347, %s350
      %p356 = scmp.eq.s32.totalorder %s39, 0
      %p357 = por %p355, %p356
      %p358 = scmp.ne.s32.totalorder %s347, %s350
      %p359 = scmp.eq.s32.totalorder %s44, 3
      %p360 = por %p358, %p359
      %p361 = scmp.ne.s32.totalorder %s350, %s351
      %p362 = scmp.eq.s32.totalorder %s44, 0
      %p363 = por %p361, %p362
      %p364 = scmp.ne.s32.totalorder %s350, %s351
      %p365 = scmp.eq.s32.totalorder %s45, 3
      %p366 = por %p364, %p365
      %p368 = scmp.ne.s32.totalorder %s351, %s367
      %p369 = scmp.eq.s32.totalorder %s45, 0
      %p370 = por %p368, %p369
      %s371 = ssub.s32 %s47, %s54
      %p372 = scmp.eq.s32.totalorder %s371, 0
      %s374 = sadd.s32 %s373, 1
      %s375 = scalar_select %p372, %s373, %s374
      %p378 = pneg %p372
      %p379 = scmp.eq.s32.totalorder %s39, 3
      %p380 = por %p378, %p379
      %p381 = scmp.ne.s32.totalorder %s373, %s376
      %p382 = scmp.eq.s32.totalorder %s39, 0
      %p383 = por %p381, %p382
      %p384 = scmp.ne.s32.totalorder %s373, %s376
      %p385 = scmp.eq.s32.totalorder %s44, 3
      %p386 = por %p384, %p385
      %p387 = scmp.ne.s32.totalorder %s376, %s377
      %p388 = scmp.eq.s32.totalorder %s44, 0
      %p389 = por %p387, %p388
      %p390 = scmp.ne.s32.totalorder %s376, %s377
      %p391 = scmp.eq.s32.totalorder %s45, 3
      %p392 = por %p390, %p391
      %p394 = scmp.ne.s32.totalorder %s377, %s393
      %p395 = scmp.eq.s32.totalorder %s45, 0
      %p396 = por %p394, %p395
      %s397 = ssub.s32 %s47, %s54
      %p398 = scmp.eq.s32.totalorder %s397, 0
      %s400 = sadd.s32 %s399, 1
      %s401 = scalar_select %p398, %s399, %s400
      %p404 = pneg %p398
      %p405 = scmp.eq.s32.totalorder %s39, 3
      %p406 = por %p404, %p405
      %p407 = scmp.ne.s32.totalorder %s399, %s402
      %p408 = scmp.eq.s32.totalorder %s39, 0
      %p409 = por %p407, %p408
      %p410 = scmp.ne.s32.totalorder %s399, %s402
      %p411 = scmp.eq.s32.totalorder %s44, 3
      %p412 = por %p410, %p411
      %p413 = scmp.ne.s32.totalorder %s402, %s403
      %p414 = scmp.eq.s32.totalorder %s44, 0
      %p415 = por %p413, %p414
      %p416 = scmp.ne.s32.totalorder %s402, %s403
      %p417 = scmp.eq.s32.totalorder %s45, 3
      %p418 = por %p416, %p417
      %p420 = scmp.ne.s32.totalorder %s403, %s419
      %p421 = scmp.eq.s32.totalorder %s45, 0
      %p422 = por %p420, %p421
      %s423 = ssub.s32 %s47, %s54
      %p424 = scmp.eq.s32.totalorder %s423, 0
      %s426 = sadd.s32 %s425, 1
      %s427 = scalar_select %p424, %s425, %s426
      %p430 = pneg %p424
      %p431 = scmp.eq.s32.totalorder %s39, 3
      %p432 = por %p430, %p431
      %p433 = scmp.ne.s32.totalorder %s425, %s428
      %p434 = scmp.eq.s32.totalorder %s39, 0
      %p435 = por %p433, %p434
      %p436 = scmp.ne.s32.totalorder %s425, %s428
      %p437 = scmp.eq.s32.totalorder %s44, 3
      %p438 = por %p436, %p437
      %p439 = scmp.ne.s32.totalorder %s428, %s429
      %p440 = scmp.eq.s32.totalorder %s44, 0
      %p441 = por %p439, %p440
      %p442 = scmp.ne.s32.totalorder %s428, %s429
      %p443 = scmp.eq.s32.totalorder %s45, 3
      %p444 = por %p442, %p443
      %p446 = scmp.ne.s32.totalorder %s429, %s445
      %p447 = scmp.eq.s32.totalorder %s45, 0
      %p448 = por %p446, %p447
      %s449 = ssub.s32 %s47, %s54
      %p450 = scmp.eq.s32.totalorder %s449, 0
      %s452 = sadd.s32 %s451, 1
      %s453 = scalar_select %p450, %s451, %s452
      %p456 = pneg %p450
      %p457 = scmp.eq.s32.totalorder %s39, 3
      %p458 = por %p456, %p457
      %p459 = scmp.ne.s32.totalorder %s451, %s454
      %p460 = scmp.eq.s32.totalorder %s39, 0
      %p461 = por %p459, %p460
      %p462 = scmp.ne.s32.totalorder %s451, %s454
      %p463 = scmp.eq.s32.totalorder %s44, 3
      %p464 = por %p462, %p463
      %p465 = scmp.ne.s32.totalorder %s454, %s455
      %p466 = scmp.eq.s32.totalorder %s44, 0
      %p467 = por %p465, %p466
      %p468 = scmp.ne.s32.totalorder %s454, %s455
      %p469 = scmp.eq.s32.totalorder %s45, 3
      %p470 = por %p468, %p469
      %p472 = scmp.ne.s32.totalorder %s455, %s471
      %p473 = scmp.eq.s32.totalorder %s45, 0
      %p474 = por %p472, %p473
      %s475 = ssub.s32 %s47, %s54
      %p476 = scmp.eq.s32.totalorder %s475, 0
      %s478 = sadd.s32 %s477, 1
      %s479 = scalar_select %p476, %s477, %s478
      %p482 = pneg %p476
      %p483 = scmp.eq.s32.totalorder %s39, 3
      %p484 = por %p482, %p483
      %p485 = scmp.ne.s32.totalorder %s477, %s480
      %p486 = scmp.eq.s32.totalorder %s39, 0
      %p487 = por %p485, %p486
      %p488 = scmp.ne.s32.totalorder %s477, %s480
      %p489 = scmp.eq.s32.totalorder %s44, 3
      %p490 = por %p488, %p489
      %p491 = scmp.ne.s32.totalorder %s480, %s481
      %p492 = scmp.eq.s32.totalorder %s44, 0
      %p493 = por %p491, %p492
      %p494 = scmp.ne.s32.totalorder %s480, %s481
      %p495 = scmp.eq.s32.totalorder %s45, 3
      %p496 = por %p494, %p495
      %p498 = scmp.ne.s32.totalorder %s481, %s497
      %p499 = scmp.eq.s32.totalorder %s45, 0
      %p500 = por %p498, %p499
      %s501 = ssub.s32 %s47, %s54
      %p502 = scmp.eq.s32.totalorder %s501, 0
      %s504 = sadd.s32 %s503, 1
      %s505 = scalar_select %p502, %s503, %s504
      %p508 = pneg %p502
      %p509 = scmp.eq.s32.totalorder %s39, 3
      %p510 = por %p508, %p509
      %p511 = scmp.ne.s32.totalorder %s503, %s506
      %p512 = scmp.eq.s32.totalorder %s39, 0
      %p513 = por %p511, %p512
      %p514 = scmp.ne.s32.totalorder %s503, %s506
      %p515 = scmp.eq.s32.totalorder %s44, 3
      %p516 = por %p514, %p515
      %p517 = scmp.ne.s32.totalorder %s506, %s507
      %p518 = scmp.eq.s32.totalorder %s44, 0
      %p519 = por %p517, %p518
      %p520 = scmp.ne.s32.totalorder %s506, %s507
      %p521 = scmp.eq.s32.totalorder %s45, 3
      %p522 = por %p520, %p521
      %p524 = scmp.ne.s32.totalorder %s507, %s523
      %p525 = scmp.eq.s32.totalorder %s45, 0
      %p526 = por %p524, %p525
      %s527 = ssub.s32 %s46, %s58
      %p528 = scmp.eq.s32.totalorder %s527, 0
      %s530 = sadd.s32 %s529, 1
      %s531 = scalar_select %p528, %s529, %s530
      %p534 = pneg %p528
      %p535 = scmp.eq.s32.totalorder %s39, 3
      %p536 = por %p534, %p535
      %p537 = scmp.ne.s32.totalorder %s529, %s532
      %p538 = scmp.eq.s32.totalorder %s39, 0
      %p539 = por %p537, %p538
      %p540 = scmp.ne.s32.totalorder %s529, %s532
      %p541 = scmp.eq.s32.totalorder %s44, 3
      %p542 = por %p540, %p541
      %p543 = scmp.ne.s32.totalorder %s532, %s533
      %p544 = scmp.eq.s32.totalorder %s44, 0
      %p545 = por %p543, %p544
      %p546 = scmp.ne.s32.totalorder %s532, %s533
      %p547 = scmp.eq.s32.totalorder %s45, 3
      %p548 = por %p546, %p547
      %p550 = scmp.ne.s32.totalorder %s533, %s549
      %p551 = scmp.eq.s32.totalorder %s45, 0
      %p552 = por %p550, %p551
      %p553 = scmp.le.s32.totalorder 1, %s39
      %p554 = scmp.lt.s32.totalorder %s39, 5
      %p555 = pnand %p553, %p554
      %p556 = pneg %p555
      // Predicated region
      $region9: #{tpu_custom_call.1} parent=5 // pred_check
        _
      $region10: #{tpu_custom_call.1} parent=5 // pred_check_branch
        %558 = sbr.rel (%p555) target = $region12
      $region11: #{tpu_custom_call.1} parent=5 // pred_region
        %s559 = ssub.s32 %s39, 1
      $region12: #{tpu_custom_call.1} parent=5 // pred_fallthru
        _
      %p560 = scmp.lt.s32.totalorder %s39, 4
      // Predicated region
      $region13: #{tpu_custom_call.1} parent=5 // pred_check
        %p561 = pneg %p560
      $region14: #{tpu_custom_call.1} parent=5 // pred_check_branch
        %563 = sbr.rel (%p561) target = $region16
      $region15: #{tpu_custom_call.1} parent=5 // pred_region
        // Predicated region
        $region17: #{tpu_custom_call.1} parent=15 // pred_check
          %p564 = pneg %p71
        $region18: #{tpu_custom_call.1} parent=15 // pred_check_branch
          %566 = sbr.rel (%p564) target = $region20
        $region19: #{tpu_custom_call.1} parent=15 // pred_region
          %s567 = sand.u32 %s61, 1
          %s568 = scalar_lea.sflag [#allocation3], %s567
          %s569 = sand.u32 %s61, 1
          %s570 = smul.addr %s569, 8
          %s571 = scalar_lea.vmem [#allocation2], %s570
          %s573 = ssub.s32 128, 128
          %574 = vsyncadd %s568, %s573
          %s575 = smul.addr %s46, 128
          %s576 = scalar_lea.hbm %s0, %s575
          %s578 = sshll.u32 %s571, 4
          %s579 = int_to_ptr.vmem [resolvable:$true] %s578
          %581 = dma.hbm_to_vmem [thread:$0]  %s576, 128, %s579, %s568
        $region20: #{tpu_custom_call.1} parent=15 // pred_fallthru
          _
        // Predicated region
        $region21: #{tpu_custom_call.1} parent=15 // pred_check
          %p582 = pneg %p97
        $region22: #{tpu_custom_call.1} parent=15 // pred_check_branch
          %584 = sbr.rel (%p582) target = $region24
        $region23: #{tpu_custom_call.1} parent=15 // pred_region
          %p585 = scmp.lt.s32.totalorder %s46, 1
          %s586 = scalar_select %p585, %s46, 1
          %s587 = scalar_lea.vmem %s1, %s586
        $region24: #{tpu_custom_call.1} parent=15 // pred_fallthru
          _
        // Predicated region
        $region25: #{tpu_custom_call.1} parent=15 // pred_check
          %p588 = pneg %p123
        $region26: #{tpu_custom_call.1} parent=15 // pred_check_branch
          %590 = sbr.rel (%p588) target = $region28
        $region27: #{tpu_custom_call.1} parent=15 // pred_region
          %s591 = sand.u32 %s39, 1
          %s592 = scalar_lea.sflag [#allocation6], %s591
          %s593 = sand.u32 %s113, 1
          %s594 = smul.addr %s593, 64
          %s595 = scalar_lea.vmem [#allocation5], %s594
          %s597 = ssub.s32 1024, 1024
          %598 = vsyncadd %s592, %s597
          %s599 = smul.addr %s47, 16
          %s600 = smul.addr %s599, 64
          %s601 = scalar_lea.hbm %s2, %s600
          %s602 = sshll.u32 %s595, 4
          %s603 = int_to_ptr.vmem [resolvable:$true] %s602
          %608 = dma.hbm_to_vmem [thread:$0]  %s601, 1024, %s603, %s592, 64, 64, 4
        $region28: #{tpu_custom_call.1} parent=15 // pred_fallthru
          _
        // Predicated region
        $region29: #{tpu_custom_call.1} parent=15 // pred_check
          %p609 = pneg %p149
        $region30: #{tpu_custom_call.1} parent=15 // pred_check_branch
          %611 = sbr.rel (%p609) target = $region32
        $region31: #{tpu_custom_call.1} parent=15 // pred_region
          %p612 = scmp.lt.s32.totalorder %s47, 1
          %s613 = scalar_select %p612, %s47, 1
          %s614 = scalar_lea.vmem %s3, %s613
        $region32: #{tpu_custom_call.1} parent=15 // pred_fallthru
          _
        // Predicated region
        $region33: #{tpu_custom_call.1} parent=15 // pred_check
          %p615 = pneg %p175
        $region34: #{tpu_custom_call.1} parent=15 // pred_check_branch
          %617 = sbr.rel (%p615) target = $region36
        $region35: #{tpu_custom_call.1} parent=15 // pred_region
          %s618 = sand.u32 %s39, 1
          %s619 = scalar_lea.sflag [#allocation6], %s618
          %s620 = sand.u32 %s165, 1
          %s621 = smul.addr %s620, 64
          %s622 = scalar_lea.vmem [#allocation7], %s621
          %s624 = ssub.s32 1024, 1024
          %625 = vsyncadd %s619, %s624
          %s626 = smul.addr %s47, 16
          %s627 = smul.addr %s626, 64
          %s628 = scalar_lea.hbm %s4, %s627
          %s629 = sshll.u32 %s622, 4
          %s630 = int_to_ptr.vmem [resolvable:$true] %s629
          %635 = dma.hbm_to_vmem [thread:$0]  %s628, 1024, %s630, %s619, 64, 64, 4
        $region36: #{tpu_custom_call.1} parent=15 // pred_fallthru
          _
        // Predicated region
        $region37: #{tpu_custom_call.1} parent=15 // pred_check
          %p636 = pneg %p201
        $region38: #{tpu_custom_call.1} parent=15 // pred_check_branch
          %638 = sbr.rel (%p636) target = $region40
        $region39: #{tpu_custom_call.1} parent=15 // pred_region
          %p639 = scmp.lt.s32.totalorder %s47, 1
          %s640 = scalar_select %p639, %s47, 1
          %s641 = scalar_lea.vmem %s5, %s640
        $region40: #{tpu_custom_call.1} parent=15 // pred_fallthru
          _
        // Predicated region
        $region41: #{tpu_custom_call.1} parent=15 // pred_check
          %p642 = pneg %p227
        $region42: #{tpu_custom_call.1} parent=15 // pred_check_branch
          %644 = sbr.rel (%p642) target = $region44
        $region43: #{tpu_custom_call.1} parent=15 // pred_region
          %s645 = sand.u32 %s39, 1
          %s646 = scalar_lea.sflag [#allocation9], %s645
          %s647 = sand.u32 %s217, 1
          %s648 = smul.addr %s647, 64
          %s649 = scalar_lea.vmem [#allocation8], %s648
          %s651 = ssub.s32 1024, 1024
          %652 = vsyncadd %s646, %s651
          %s653 = smul.addr %s47, 16
          %s654 = smul.addr %s653, 64
          %s655 = scalar_lea.hbm %s6, %s654
          %s656 = sshll.u32 %s649, 4
          %s657 = int_to_ptr.vmem [resolvable:$true] %s656
          %662 = dma.hbm_to_vmem [thread:$0]  %s655, 1024, %s657, %s646, 64, 64, 4
        $region44: #{tpu_custom_call.1} parent=15 // pred_fallthru
          _
        // Predicated region
        $region45: #{tpu_custom_call.1} parent=15 // pred_check
          %p663 = pneg %p253
        $region46: #{tpu_custom_call.1} parent=15 // pred_check_branch
          %665 = sbr.rel (%p663) target = $region48
        $region47: #{tpu_custom_call.1} parent=15 // pred_region
          %p666 = scmp.lt.s32.totalorder %s47, 1
          %s667 = scalar_select %p666, %s47, 1
          %s668 = scalar_lea.vmem %s7, %s667
        $region48: #{tpu_custom_call.1} parent=15 // pred_fallthru
          _
        // Predicated region
        $region49: #{tpu_custom_call.1} parent=15 // pred_check
          %p669 = pneg %p279
        $region50: #{tpu_custom_call.1} parent=15 // pred_check_branch
          %671 = sbr.rel (%p669) target = $region52
        $region51: #{tpu_custom_call.1} parent=15 // pred_region
          %s672 = sand.u32 %s39, 1
          %s673 = scalar_lea.sflag [#allocation9], %s672
          %s674 = sand.u32 %s269, 1
          %s675 = smul.addr %s674, 64
          %s676 = scalar_lea.vmem [#allocation10], %s675
          %s678 = ssub.s32 1024, 1024
          %679 = vsyncadd %s673, %s678
          %s680 = smul.addr %s47, 16
          %s681 = smul.addr %s680, 64
          %s682 = scalar_lea.hbm %s8, %s681
          %s683 = sshll.u32 %s676, 4
          %s684 = int_to_ptr.vmem [resolvable:$true] %s683
          %689 = dma.hbm_to_vmem [thread:$0]  %s682, 1024, %s684, %s673, 64, 64, 4
        $region52: #{tpu_custom_call.1} parent=15 // pred_fallthru
          _
        // Predicated region
        $region53: #{tpu_custom_call.1} parent=15 // pred_check
          %p690 = pneg %p305
        $region54: #{tpu_custom_call.1} parent=15 // pred_check_branch
          %692 = sbr.rel (%p690) target = $region56
        $region55: #{tpu_custom_call.1} parent=15 // pred_region
          %p693 = scmp.lt.s32.totalorder %s47, 1
          %s694 = scalar_select %p693, %s47, 1
          %s695 = scalar_lea.vmem %s9, %s694
        $region56: #{tpu_custom_call.1} parent=15 // pred_fallthru
          _
        // Predicated region
        $region57: #{tpu_custom_call.1} parent=15 // pred_check
          %p696 = pneg %p331
        $region58: #{tpu_custom_call.1} parent=15 // pred_check_branch
          %698 = sbr.rel (%p696) target = $region60
        $region59: #{tpu_custom_call.1} parent=15 // pred_region
          %p699 = scmp.lt.s32.totalorder %s47, 1
          %s700 = scalar_select %p699, %s47, 1
          %s701 = scalar_lea.vmem %s10, %s700
        $region60: #{tpu_custom_call.1} parent=15 // pred_fallthru
          _
        // Predicated region
        $region61: #{tpu_custom_call.1} parent=15 // pred_check
          %p702 = pneg %p357
        $region62: #{tpu_custom_call.1} parent=15 // pred_check_branch
          %704 = sbr.rel (%p702) target = $region64
        $region63: #{tpu_custom_call.1} parent=15 // pred_region
          %p705 = scmp.lt.s32.totalorder %s47, 1
          %s706 = scalar_select %p705, %s47, 1
          %s707 = scalar_lea.vmem %s11, %s706
        $region64: #{tpu_custom_call.1} parent=15 // pred_fallthru
          _
        // Predicated region
        $region65: #{tpu_custom_call.1} parent=15 // pred_check
          %p708 = pneg %p383
        $region66: #{tpu_custom_call.1} parent=15 // pred_check_branch
          %710 = sbr.rel (%p708) target = $region68
        $region67: #{tpu_custom_call.1} parent=15 // pred_region
          %s711 = sand.u32 %s39, 1
          %s712 = scalar_lea.sflag [#allocation12], %s711
          %s713 = sand.u32 %s373, 1
          %s714 = smul.addr %s713, 64
          %s715 = scalar_lea.vmem [#allocation11], %s714
          %s717 = ssub.s32 1024, 1024
          %718 = vsyncadd %s712, %s717
          %s719 = smul.addr %s47, 16
          %s720 = smul.addr %s719, 64
          %s721 = scalar_lea.hbm %s12, %s720
          %s722 = sshll.u32 %s715, 4
          %s723 = int_to_ptr.vmem [resolvable:$true] %s722
          %728 = dma.hbm_to_vmem [thread:$0]  %s721, 1024, %s723, %s712, 64, 64, 4
        $region68: #{tpu_custom_call.1} parent=15 // pred_fallthru
          _
        // Predicated region
        $region69: #{tpu_custom_call.1} parent=15 // pred_check
          %p729 = pneg %p409
        $region70: #{tpu_custom_call.1} parent=15 // pred_check_branch
          %731 = sbr.rel (%p729) target = $region72
        $region71: #{tpu_custom_call.1} parent=15 // pred_region
          %p732 = scmp.lt.s32.totalorder %s47, 1
          %s733 = scalar_select %p732, %s47, 1
          %s734 = scalar_lea.vmem %s13, %s733
        $region72: #{tpu_custom_call.1} parent=15 // pred_fallthru
          _
        // Predicated region
        $region73: #{tpu_custom_call.1} parent=15 // pred_check
          %p735 = pneg %p435
        $region74: #{tpu_custom_call.1} parent=15 // pred_check_branch
          %737 = sbr.rel (%p735) target = $region76
        $region75: #{tpu_custom_call.1} parent=15 // pred_region
          %s738 = sand.u32 %s39, 1
          %s739 = scalar_lea.sflag [#allocation12], %s738
          %s740 = sand.u32 %s425, 1
          %s741 = smul.addr %s740, 64
          %s742 = scalar_lea.vmem [#allocation13], %s741
          %s744 = ssub.s32 1024, 1024
          %745 = vsyncadd %s739, %s744
          %s746 = smul.addr %s47, 16
          %s747 = smul.addr %s746, 64
          %s748 = scalar_lea.hbm %s14, %s747
          %s749 = sshll.u32 %s742, 4
          %s750 = int_to_ptr.vmem [resolvable:$true] %s749
          %755 = dma.hbm_to_vmem [thread:$0]  %s748, 1024, %s750, %s739, 64, 64, 4
        $region76: #{tpu_custom_call.1} parent=15 // pred_fallthru
          _
        // Predicated region
        $region77: #{tpu_custom_call.1} parent=15 // pred_check
          %p756 = pneg %p461
        $region78: #{tpu_custom_call.1} parent=15 // pred_check_branch
          %758 = sbr.rel (%p756) target = $region80
        $region79: #{tpu_custom_call.1} parent=15 // pred_region
          %p759 = scmp.lt.s32.totalorder %s47, 1
          %s760 = scalar_select %p759, %s47, 1
          %s761 = scalar_lea.vmem %s15, %s760
        $region80: #{tpu_custom_call.1} parent=15 // pred_fallthru
          _
        // Predicated region
        $region81: #{tpu_custom_call.1} parent=15 // pred_check
          %p762 = pneg %p487
        $region82: #{tpu_custom_call.1} parent=15 // pred_check_branch
          %764 = sbr.rel (%p762) target = $region84
        $region83: #{tpu_custom_call.1} parent=15 // pred_region
          %p765 = scmp.lt.s32.totalorder %s47, 1
          %s766 = scalar_select %p765, %s47, 1
          %s767 = scalar_lea.vmem %s16, %s766
        $region84: #{tpu_custom_call.1} parent=15 // pred_fallthru
          _
        // Predicated region
        $region85: #{tpu_custom_call.1} parent=15 // pred_check
          %p768 = pneg %p513
        $region86: #{tpu_custom_call.1} parent=15 // pred_check_branch
          %770 = sbr.rel (%p768) target = $region88
        $region87: #{tpu_custom_call.1} parent=15 // pred_region
          %p771 = scmp.lt.s32.totalorder %s47, 1
          %s772 = scalar_select %p771, %s47, 1
          %s773 = scalar_lea.vmem %s17, %s772
        $region88: #{tpu_custom_call.1} parent=15 // pred_fallthru
          _
      $region16: #{tpu_custom_call.1} parent=5 // pred_fallthru
        _
      %p774 = scmp.le.s32.totalorder 1, %s39
      %p775 = scmp.lt.s32.totalorder %s39, 5
      %p776 = pnand %p774, %p775
      %p777 = pneg %p776
      // Predicated region
      $region89: #{tpu_custom_call.1} parent=5 // pred_check
        _
      $region90: #{tpu_custom_call.1} parent=5 // pred_check_branch
        %779 = sbr.rel (%p776) target = $region92
      $region91: #{tpu_custom_call.1} parent=5 // pred_region
        %s780 = ssub.s32 %s39, 1
        %s781 = sand.u32 %s64, 1
        %s782 = scalar_lea.sflag [#allocation3], %s781
        %s783 = sand.u32 %s64, 1
        %s784 = smul.addr %s783, 8
        %s785 = scalar_lea.vmem [#allocation2], %s784
        // Predicated region
        $region93: #{tpu_custom_call.1} parent=91 // pred_check
          %p786 = pneg %p77
        $region94: #{tpu_custom_call.1} parent=91 // pred_check_branch
          %788 = sbr.rel (%p786) target = $region96
        $region95: #{tpu_custom_call.1} parent=91 // pred_region
          %789 = dma.done %s782, 128
        $region96: #{tpu_custom_call.1} parent=91 // pred_fallthru
          _
        %s790 = sand.u32 %s44, 1
        %s791 = scalar_lea.sflag [#allocation6], %s790
        %s792 = sand.u32 %s116, 1
        %s793 = smul.addr %s792, 64
        %s794 = scalar_lea.vmem [#allocation5], %s793
        // Predicated region
        $region97: #{tpu_custom_call.1} parent=91 // pred_check
          %p795 = pneg %p129
        $region98: #{tpu_custom_call.1} parent=91 // pred_check_branch
          %797 = sbr.rel (%p795) target = $region100
        $region99: #{tpu_custom_call.1} parent=91 // pred_region
          %798 = dma.done %s791, 1024
        $region100: #{tpu_custom_call.1} parent=91 // pred_fallthru
          _
        %s799 = sand.u32 %s44, 1
        %s800 = scalar_lea.sflag [#allocation6], %s799
        %s801 = sand.u32 %s168, 1
        %s802 = smul.addr %s801, 64
        %s803 = scalar_lea.vmem [#allocation7], %s802
        // Predicated region
        $region101: #{tpu_custom_call.1} parent=91 // pred_check
          %p804 = pneg %p181
        $region102: #{tpu_custom_call.1} parent=91 // pred_check_branch
          %806 = sbr.rel (%p804) target = $region104
        $region103: #{tpu_custom_call.1} parent=91 // pred_region
          %807 = dma.done %s800, 1024
        $region104: #{tpu_custom_call.1} parent=91 // pred_fallthru
          _
        %s808 = sand.u32 %s44, 1
        %s809 = scalar_lea.sflag [#allocation9], %s808
        %s810 = sand.u32 %s220, 1
        %s811 = smul.addr %s810, 64
        %s812 = scalar_lea.vmem [#allocation8], %s811
        // Predicated region
        $region105: #{tpu_custom_call.1} parent=91 // pred_check
          %p813 = pneg %p233
        $region106: #{tpu_custom_call.1} parent=91 // pred_check_branch
          %815 = sbr.rel (%p813) target = $region108
        $region107: #{tpu_custom_call.1} parent=91 // pred_region
          %816 = dma.done %s809, 1024
        $region108: #{tpu_custom_call.1} parent=91 // pred_fallthru
          _
        %s817 = sand.u32 %s44, 1
        %s818 = scalar_lea.sflag [#allocation9], %s817
        %s819 = sand.u32 %s272, 1
        %s820 = smul.addr %s819, 64
        %s821 = scalar_lea.vmem [#allocation10], %s820
        // Predicated region
        $region109: #{tpu_custom_call.1} parent=91 // pred_check
          %p822 = pneg %p285
        $region110: #{tpu_custom_call.1} parent=91 // pred_check_branch
          %824 = sbr.rel (%p822) target = $region112
        $region111: #{tpu_custom_call.1} parent=91 // pred_region
          %825 = dma.done %s818, 1024
        $region112: #{tpu_custom_call.1} parent=91 // pred_fallthru
          _
        %s826 = sand.u32 %s44, 1
        %s827 = scalar_lea.sflag [#allocation12], %s826
        %s828 = sand.u32 %s376, 1
        %s829 = smul.addr %s828, 64
        %s830 = scalar_lea.vmem [#allocation11], %s829
        // Predicated region
        $region113: #{tpu_custom_call.1} parent=91 // pred_check
          %p831 = pneg %p389
        $region114: #{tpu_custom_call.1} parent=91 // pred_check_branch
          %833 = sbr.rel (%p831) target = $region116
        $region115: #{tpu_custom_call.1} parent=91 // pred_region
          %834 = dma.done %s827, 1024
        $region116: #{tpu_custom_call.1} parent=91 // pred_fallthru
          _
        %s835 = sand.u32 %s44, 1
        %s836 = scalar_lea.sflag [#allocation12], %s835
        %s837 = sand.u32 %s428, 1
        %s838 = smul.addr %s837, 64
        %s839 = scalar_lea.vmem [#allocation13], %s838
        // Predicated region
        $region117: #{tpu_custom_call.1} parent=91 // pred_check
          %p840 = pneg %p441
        $region118: #{tpu_custom_call.1} parent=91 // pred_check_branch
          %842 = sbr.rel (%p840) target = $region120
        $region119: #{tpu_custom_call.1} parent=91 // pred_region
          %843 = dma.done %s836, 1024
        $region120: #{tpu_custom_call.1} parent=91 // pred_fallthru
          _
        %s844 = sand.u32 %s64, 1
        %s845 = scalar_lea.sflag [#allocation3], %s844
        %s846 = sand.u32 %s64, 1
        %s847 = smul.addr %s846, 8
        %s848 = scalar_lea.vmem [#allocation2], %s847
        %p849 = pneg %p77
        %p850 = pneg %p74
        %p851 = scmp.lt.s32.totalorder %s48, 1
        %s852 = scalar_select %p851, %s48, 1
        %s853 = scalar_lea.vmem %s1, %s852
        %p854 = pneg %p103
        %p855 = pneg %p100
        %s856 = sand.u32 %s44, 1
        %s857 = scalar_lea.sflag [#allocation6], %s856
        %s858 = sand.u32 %s116, 1
        %s859 = smul.addr %s858, 64
        %s860 = scalar_lea.vmem [#allocation5], %s859
        %p861 = pneg %p129
        %p862 = pneg %p126
        %p863 = scmp.lt.s32.totalorder %s49, 1
        %s864 = scalar_select %p863, %s49, 1
        %s865 = scalar_lea.vmem %s3, %s864
        %p866 = pneg %p155
        %p867 = pneg %p152
        %s868 = sand.u32 %s44, 1
        %s869 = scalar_lea.sflag [#allocation6], %s868
        %s870 = sand.u32 %s168, 1
        %s871 = smul.addr %s870, 64
        %s872 = scalar_lea.vmem [#allocation7], %s871
        %p873 = pneg %p181
        %p874 = pneg %p178
        %p875 = scmp.lt.s32.totalorder %s49, 1
        %s876 = scalar_select %p875, %s49, 1
        %s877 = scalar_lea.vmem %s5, %s876
        %p878 = pneg %p207
        %p879 = pneg %p204
        %s880 = sand.u32 %s44, 1
        %s881 = scalar_lea.sflag [#allocation9], %s880
        %s882 = sand.u32 %s220, 1
        %s883 = smul.addr %s882, 64
        %s884 = scalar_lea.vmem [#allocation8], %s883
        %p885 = pneg %p233
        %p886 = pneg %p230
        %p887 = scmp.lt.s32.totalorder %s49, 1
        %s888 = scalar_select %p887, %s49, 1
        %s889 = scalar_lea.vmem %s7, %s888
        %p890 = pneg %p259
        %p891 = pneg %p256
        %s892 = sand.u32 %s44, 1
        %s893 = scalar_lea.sflag [#allocation9], %s892
        %s894 = sand.u32 %s272, 1
        %s895 = smul.addr %s894, 64
        %s896 = scalar_lea.vmem [#allocation10], %s895
        %p897 = pneg %p285
        %p898 = pneg %p282
        %p899 = scmp.lt.s32.totalorder %s49, 1
        %s900 = scalar_select %p899, %s49, 1
        %s901 = scalar_lea.vmem %s9, %s900
        %p902 = pneg %p311
        %p903 = pneg %p308
        %p904 = scmp.lt.s32.totalorder %s49, 1
        %s905 = scalar_select %p904, %s49, 1
        %s906 = scalar_lea.vmem %s10, %s905
        %p907 = pneg %p337
        %p908 = pneg %p334
        %p909 = scmp.lt.s32.totalorder %s49, 1
        %s910 = scalar_select %p909, %s49, 1
        %s911 = scalar_lea.vmem %s11, %s910
        %p912 = pneg %p363
        %p913 = pneg %p360
        %s914 = sand.u32 %s44, 1
        %s915 = scalar_lea.sflag [#allocation12], %s914
        %s916 = sand.u32 %s376, 1
        %s917 = smul.addr %s916, 64
        %s918 = scalar_lea.vmem [#allocation11], %s917
        %p919 = pneg %p389
        %p920 = pneg %p386
        %p921 = scmp.lt.s32.totalorder %s49, 1
        %s922 = scalar_select %p921, %s49, 1
        %s923 = scalar_lea.vmem %s13, %s922
        %p924 = pneg %p415
        %p925 = pneg %p412
        %s926 = sand.u32 %s44, 1
        %s927 = scalar_lea.sflag [#allocation12], %s926
        %s928 = sand.u32 %s428, 1
        %s929 = smul.addr %s928, 64
        %s930 = scalar_lea.vmem [#allocation13], %s929
        %p931 = pneg %p441
        %p932 = pneg %p438
        %p933 = scmp.lt.s32.totalorder %s49, 1
        %s934 = scalar_select %p933, %s49, 1
        %s935 = scalar_lea.vmem %s15, %s934
        %p936 = pneg %p467
        %p937 = pneg %p464
        %p938 = scmp.lt.s32.totalorder %s49, 1
        %s939 = scalar_select %p938, %s49, 1
        %s940 = scalar_lea.vmem %s16, %s939
        %p941 = pneg %p493
        %p942 = pneg %p490
        %p943 = scmp.lt.s32.totalorder %s49, 1
        %s944 = scalar_select %p943, %s49, 1
        %s945 = scalar_lea.vmem %s17, %s944
        %p946 = pneg %p519
        %p947 = pneg %p516
        %p948 = pneg %p545
        %p949 = pneg %p542
        %s950 = sand.u32 %s532, 1
        %s951 = scalar_lea.sflag [#allocation4], %s950
        %s952 = sand.u32 %s532, 1
        %s953 = smul.addr %s952, 8
        %s954 = scalar_lea.vmem [#allocation14], %s953
        %p955 = scmp.lt.s32.totalorder %s48, 1
        %s956 = scalar_select %p955, %s48, 1
        %s957 = scalar_lea.vmem %s1, %s956
        %p958 = scmp.lt.s32.totalorder %s49, 1
        %s959 = scalar_select %p958, %s49, 1
        %s960 = scalar_lea.vmem %s3, %s959
        %p961 = scmp.lt.s32.totalorder %s49, 1
        %s962 = scalar_select %p961, %s49, 1
        %s963 = scalar_lea.vmem %s5, %s962
        %p964 = scmp.lt.s32.totalorder %s49, 1
        %s965 = scalar_select %p964, %s49, 1
        %s966 = scalar_lea.vmem %s7, %s965
        %p967 = scmp.lt.s32.totalorder %s49, 1
        %s968 = scalar_select %p967, %s49, 1
        %s969 = scalar_lea.vmem %s9, %s968
        %p970 = scmp.lt.s32.totalorder %s49, 1
        %s971 = scalar_select %p970, %s49, 1
        %s972 = scalar_lea.vmem %s10, %s971
        %p973 = scmp.lt.s32.totalorder %s49, 1
        %s974 = scalar_select %p973, %s49, 1
        %s975 = scalar_lea.vmem %s11, %s974
        %p976 = scmp.lt.s32.totalorder %s49, 1
        %s977 = scalar_select %p976, %s49, 1
        %s978 = scalar_lea.vmem %s13, %s977
        %p979 = scmp.lt.s32.totalorder %s49, 1
        %s980 = scalar_select %p979, %s49, 1
        %s981 = scalar_lea.vmem %s15, %s980
        %p982 = scmp.lt.s32.totalorder %s49, 1
        %s983 = scalar_select %p982, %s49, 1
        %s984 = scalar_lea.vmem %s16, %s983
        %p985 = scmp.lt.s32.totalorder %s49, 1
        %s986 = scalar_select %p985, %s49, 1
        %s987 = scalar_lea.vmem %s17, %s986
        %p989 = scmp.eq.s32.totalorder %s49, 0
        // Predicated region
        $region121: #{tpu_custom_call.1} parent=91 // pred_check
          %p990 = pneg %p989
        $region122: #{tpu_custom_call.1} parent=91 // pred_check_branch
          %992 = sbr.rel (%p990) target = $region124
        $region123: #{tpu_custom_call.1} parent=91 // pred_region
          %v993 = vld [vmem:[%s785] sm:$0xff]
          %994 = vst [vmem:[%s954] sm:$0xff] %v993
        $region124: #{tpu_custom_call.1} parent=91 // pred_fallthru
          _
        %v995 = vld [vmem:[%s954] sm:$0xff]
        %v996 = vpack.c.bf16 %v995, %v995
        %v997 = vld [vmem:[%s794] sm:$0xf]
        %v998 = vld [vmem:[%s794 + $0x4] sm:$0xf]
        %v999 = vld [vmem:[%s794 + $0x8] sm:$0xf]
        %v1000 = vld [vmem:[%s794 + $0xc] sm:$0xf]
        %v1001 = vld [vmem:[%s794 + $0x10] sm:$0xf]
        %v1002 = vld [vmem:[%s794 + $0x14] sm:$0xf]
        %v1003 = vld [vmem:[%s794 + $0x18] sm:$0xf]
        %v1004 = vld [vmem:[%s794 + $0x1c] sm:$0xf]
        %v1005 = vld [vmem:[%s794 + $0x20] sm:$0xf]
        %v1006 = vld [vmem:[%s794 + $0x24] sm:$0xf]
        %v1007 = vld [vmem:[%s794 + $0x28] sm:$0xf]
        %v1008 = vld [vmem:[%s794 + $0x2c] sm:$0xf]
        %v1009 = vld [vmem:[%s794 + $0x30] sm:$0xf]
        %v1010 = vld [vmem:[%s794 + $0x34] sm:$0xf]
        %v1011 = vld [vmem:[%s794 + $0x38] sm:$0xf]
        %v1012 = vld [vmem:[%s794 + $0x3c] sm:$0xf]
        %v1013 = vld [vmem:[%s960] sm:$0x1]
        %v1015 = vlaneseq
        %v1016 = vshrl.u32 %v1015, 7
        %v1017 = vsub.s32 0, %v1016
        %v1018 = vrot.slane %v1013, %v1017
        %v1036 = vunpack.c.l.b16 %v997
        %v1037 = vunpack.c.l.b16 %v998
        %v1038 = vunpack.c.l.b16 %v999
        %v1039 = vunpack.c.l.b16 %v1000
        %v1040 = vunpack.c.l.b16 %v1001
        %v1041 = vunpack.c.l.b16 %v1002
        %v1042 = vunpack.c.l.b16 %v1003
        %v1043 = vunpack.c.l.b16 %v1004
        %v1044 = vunpack.c.l.b16 %v1005
        %v1045 = vunpack.c.l.b16 %v1006
        %v1046 = vunpack.c.l.b16 %v1007
        %v1047 = vunpack.c.l.b16 %v1008
        %v1048 = vunpack.c.l.b16 %v1009
        %v1049 = vunpack.c.l.b16 %v1010
        %v1050 = vunpack.c.l.b16 %v1011
        %v1051 = vunpack.c.l.b16 %v1012
        %v1052 = vpack.c.b16 %v1037, %v1036
        %v1053 = vpack.c.b16 %v1039, %v1038
        %v1054 = vpack.c.b16 %v1041, %v1040
        %v1055 = vpack.c.b16 %v1043, %v1042
        %v1056 = vpack.c.b16 %v1045, %v1044
        %v1057 = vpack.c.b16 %v1047, %v1046
        %v1058 = vpack.c.b16 %v1049, %v1048
        %v1059 = vpack.c.b16 %v1051, %v1050
        %1068 = vmatprep.subr.bf16.mxu0 0
        %1069 = vmatpush1.bf16.msra.mxu0 %v1052
        %1070 = vmatprep.subr.bf16.mxu0 0
        %1071 = vmatpush1.bf16.msra.mxu0 %v1053
        %1072 = vmatprep.subr.bf16.mxu0 0
        %1073 = vmatpush1.bf16.msra.mxu0 %v1054
        %1074 = vmatprep.subr.bf16.mxu0 0
        %1075 = vmatpush1.bf16.msra.mxu0 %v1055
        %1076 = vmatprep.subr.bf16.mxu0 0
        %1077 = vmatpush1.bf16.msra.mxu0 %v1056
        %1078 = vmatprep.subr.bf16.mxu0 0
        %1079 = vmatpush1.bf16.msra.mxu0 %v1057
        %1080 = vmatprep.subr.bf16.mxu0 0
        %1081 = vmatpush1.bf16.msra.mxu0 %v1058
        %1082 = vmatprep.subr.bf16.mxu0 0
        %1083 = vmatpush1.bf16.msra.mxu0 %v1059
        %1084 = vmatprep.subr.bf16.mxu0 0
        %1085 = vmatpush1.bf16.msra.mxu0 0
        %1086 = vmatprep.subr.bf16.mxu0 0
        %1087 = vmatpush1.bf16.msra.mxu0 0
        %1088 = vmatprep.subr.bf16.mxu0 0
        %1089 = vmatpush1.bf16.msra.mxu0 0
        %1090 = vmatprep.subr.bf16.mxu0 0
        %1091 = vmatpush1.bf16.msra.mxu0 0
        %1092 = vmatprep.subr.bf16.mxu0 0
        %1093 = vmatpush1.bf16.msra.mxu0 0
        %1094 = vmatprep.subr.bf16.mxu0 0
        %1095 = vmatpush1.bf16.msra.mxu0 0
        %1096 = vmatprep.subr.bf16.mxu0 0
        %1097 = vmatpush1.bf16.msra.mxu0 0
        %1098 = vmatprep.subr.bf16.mxu0 0
        %1099 = vmatpush1.bf16.msra.mxu0 0
        %1100 = vmatprep.mubr.bf16.mxu0 0
        %1101 = vmatmul.mubr.bf16.gmra.mrb[0].mxu0 %v996
        %v1102 = vpop.f32.mrb[0].mxu0
        %v1103 = vadd.f32 %v1018, %v1102
        %v1104 = vpop.f32.mrb[0].mxu0
        %v1105 = vpop.f32.mrb[0].mxu0
        %v1106 = vpop.f32.mrb[0].mxu0
        %1107 = vdwg.mxu0
        %v1108 = vld [vmem:[%s803] sm:$0xf]
        %v1109 = vld [vmem:[%s803 + $0x4] sm:$0xf]
        %v1110 = vld [vmem:[%s803 + $0x8] sm:$0xf]
        %v1111 = vld [vmem:[%s803 + $0xc] sm:$0xf]
        %v1112 = vld [vmem:[%s803 + $0x10] sm:$0xf]
        %v1113 = vld [vmem:[%s803 + $0x14] sm:$0xf]
        %v1114 = vld [vmem:[%s803 + $0x18] sm:$0xf]
        %v1115 = vld [vmem:[%s803 + $0x1c] sm:$0xf]
        %v1116 = vld [vmem:[%s803 + $0x20] sm:$0xf]
        %v1117 = vld [vmem:[%s803 + $0x24] sm:$0xf]
        %v1118 = vld [vmem:[%s803 + $0x28] sm:$0xf]
        %v1119 = vld [vmem:[%s803 + $0x2c] sm:$0xf]
        %v1120 = vld [vmem:[%s803 + $0x30] sm:$0xf]
        %v1121 = vld [vmem:[%s803 + $0x34] sm:$0xf]
        %v1122 = vld [vmem:[%s803 + $0x38] sm:$0xf]
        %v1123 = vld [vmem:[%s803 + $0x3c] sm:$0xf]
        %v1124 = vld [vmem:[%s963] sm:$0x1]
        %v1126 = vlaneseq
        %v1127 = vshrl.u32 %v1126, 7
        %v1128 = vsub.s32 0, %v1127
        %v1129 = vrot.slane %v1124, %v1128
        %v1147 = vunpack.c.l.b16 %v1108
        %v1148 = vunpack.c.l.b16 %v1109
        %v1149 = vunpack.c.l.b16 %v1110
        %v1150 = vunpack.c.l.b16 %v1111
        %v1151 = vunpack.c.l.b16 %v1112
        %v1152 = vunpack.c.l.b16 %v1113
        %v1153 = vunpack.c.l.b16 %v1114
        %v1154 = vunpack.c.l.b16 %v1115
        %v1155 = vunpack.c.l.b16 %v1116
        %v1156 = vunpack.c.l.b16 %v1117
        %v1157 = vunpack.c.l.b16 %v1118
        %v1158 = vunpack.c.l.b16 %v1119
        %v1159 = vunpack.c.l.b16 %v1120
        %v1160 = vunpack.c.l.b16 %v1121
        %v1161 = vunpack.c.l.b16 %v1122
        %v1162 = vunpack.c.l.b16 %v1123
        %v1163 = vpack.c.b16 %v1148, %v1147
        %v1164 = vpack.c.b16 %v1150, %v1149
        %v1165 = vpack.c.b16 %v1152, %v1151
        %v1166 = vpack.c.b16 %v1154, %v1153
        %v1167 = vpack.c.b16 %v1156, %v1155
        %v1168 = vpack.c.b16 %v1158, %v1157
        %v1169 = vpack.c.b16 %v1160, %v1159
        %v1170 = vpack.c.b16 %v1162, %v1161
        %1179 = vmatprep.subr.bf16.mxu0 0
        %1180 = vmatpush1.bf16.msra.mxu0 %v1163
        %1181 = vmatprep.subr.bf16.mxu0 0
        %1182 = vmatpush1.bf16.msra.mxu0 %v1164
        %1183 = vmatprep.subr.bf16.mxu0 0
        %1184 = vmatpush1.bf16.msra.mxu0 %v1165
        %1185 = vmatprep.subr.bf16.mxu0 0
        %1186 = vmatpush1.bf16.msra.mxu0 %v1166
        %1187 = vmatprep.subr.bf16.mxu0 0
        %1188 = vmatpush1.bf16.msra.mxu0 %v1167
        %1189 = vmatprep.subr.bf16.mxu0 0
        %1190 = vmatpush1.bf16.msra.mxu0 %v1168
        %1191 = vmatprep.subr.bf16.mxu0 0
        %1192 = vmatpush1.bf16.msra.mxu0 %v1169
        %1193 = vmatprep.subr.bf16.mxu0 0
        %1194 = vmatpush1.bf16.msra.mxu0 %v1170
        %1195 = vmatprep.subr.bf16.mxu0 0
        %1196 = vmatpush1.bf16.msra.mxu0 0
        %1197 = vmatprep.subr.bf16.mxu0 0
        %1198 = vmatpush1.bf16.msra.mxu0 0
        %1199 = vmatprep.subr.bf16.mxu0 0
        %1200 = vmatpush1.bf16.msra.mxu0 0
        %1201 = vmatprep.subr.bf16.mxu0 0
        %1202 = vmatpush1.bf16.msra.mxu0 0
        %1203 = vmatprep.subr.bf16.mxu0 0
        %1204 = vmatpush1.bf16.msra.mxu0 0
        %1205 = vmatprep.subr.bf16.mxu0 0
        %1206 = vmatpush1.bf16.msra.mxu0 0
        %1207 = vmatprep.subr.bf16.mxu0 0
        %1208 = vmatpush1.bf16.msra.mxu0 0
        %1209 = vmatprep.subr.bf16.mxu0 0
        %1210 = vmatpush1.bf16.msra.mxu0 0
        %1211 = vmatprep.mubr.bf16.mxu0 0
        %1212 = vmatmul.mubr.bf16.gmra.mrb[0].mxu0 %v996
        %v1213 = vpop.f32.mrb[0].mxu0
        %v1214 = vadd.f32 %v1129, %v1213
        %v1215 = vpop.f32.mrb[0].mxu0
        %v1216 = vpop.f32.mrb[0].mxu0
        %v1217 = vpop.f32.mrb[0].mxu0
        %1218 = vdwg.mxu0
        %v1219 = vld [vmem:[%s812] sm:$0xf]
        %v1220 = vld [vmem:[%s812 + $0x4] sm:$0xf]
        %v1221 = vld [vmem:[%s812 + $0x8] sm:$0xf]
        %v1222 = vld [vmem:[%s812 + $0xc] sm:$0xf]
        %v1223 = vld [vmem:[%s812 + $0x10] sm:$0xf]
        %v1224 = vld [vmem:[%s812 + $0x14] sm:$0xf]
        %v1225 = vld [vmem:[%s812 + $0x18] sm:$0xf]
        %v1226 = vld [vmem:[%s812 + $0x1c] sm:$0xf]
        %v1227 = vld [vmem:[%s812 + $0x20] sm:$0xf]
        %v1228 = vld [vmem:[%s812 + $0x24] sm:$0xf]
        %v1229 = vld [vmem:[%s812 + $0x28] sm:$0xf]
        %v1230 = vld [vmem:[%s812 + $0x2c] sm:$0xf]
        %v1231 = vld [vmem:[%s812 + $0x30] sm:$0xf]
        %v1232 = vld [vmem:[%s812 + $0x34] sm:$0xf]
        %v1233 = vld [vmem:[%s812 + $0x38] sm:$0xf]
        %v1234 = vld [vmem:[%s812 + $0x3c] sm:$0xf]
        %v1235 = vld [vmem:[%s966] sm:$0x1]
        %v1237 = vlaneseq
        %v1238 = vshrl.u32 %v1237, 7
        %v1239 = vsub.s32 0, %v1238
        %v1240 = vrot.slane %v1235, %v1239
        %v1258 = vunpack.c.l.b16 %v1219
        %v1259 = vunpack.c.l.b16 %v1220
        %v1260 = vunpack.c.l.b16 %v1221
        %v1261 = vunpack.c.l.b16 %v1222
        %v1262 = vunpack.c.l.b16 %v1223
        %v1263 = vunpack.c.l.b16 %v1224
        %v1264 = vunpack.c.l.b16 %v1225
        %v1265 = vunpack.c.l.b16 %v1226
        %v1266 = vunpack.c.l.b16 %v1227
        %v1267 = vunpack.c.l.b16 %v1228
        %v1268 = vunpack.c.l.b16 %v1229
        %v1269 = vunpack.c.l.b16 %v1230
        %v1270 = vunpack.c.l.b16 %v1231
        %v1271 = vunpack.c.l.b16 %v1232
        %v1272 = vunpack.c.l.b16 %v1233
        %v1273 = vunpack.c.l.b16 %v1234
        %v1274 = vpack.c.b16 %v1259, %v1258
        %v1275 = vpack.c.b16 %v1261, %v1260
        %v1276 = vpack.c.b16 %v1263, %v1262
        %v1277 = vpack.c.b16 %v1265, %v1264
        %v1278 = vpack.c.b16 %v1267, %v1266
        %v1279 = vpack.c.b16 %v1269, %v1268
        %v1280 = vpack.c.b16 %v1271, %v1270
        %v1281 = vpack.c.b16 %v1273, %v1272
        %1290 = vmatprep.subr.bf16.mxu0 0
        %1291 = vmatpush1.bf16.msra.mxu0 %v1274
        %1292 = vmatprep.subr.bf16.mxu0 0
        %1293 = vmatpush1.bf16.msra.mxu0 %v1275
        %1294 = vmatprep.subr.bf16.mxu0 0
        %1295 = vmatpush1.bf16.msra.mxu0 %v1276
        %1296 = vmatprep.subr.bf16.mxu0 0
        %1297 = vmatpush1.bf16.msra.mxu0 %v1277
        %1298 = vmatprep.subr.bf16.mxu0 0
        %1299 = vmatpush1.bf16.msra.mxu0 %v1278
        %1300 = vmatprep.subr.bf16.mxu0 0
        %1301 = vmatpush1.bf16.msra.mxu0 %v1279
        %1302 = vmatprep.subr.bf16.mxu0 0
        %1303 = vmatpush1.bf16.msra.mxu0 %v1280
        %1304 = vmatprep.subr.bf16.mxu0 0
        %1305 = vmatpush1.bf16.msra.mxu0 %v1281
        %1306 = vmatprep.subr.bf16.mxu0 0
        %1307 = vmatpush1.bf16.msra.mxu0 0
        %1308 = vmatprep.subr.bf16.mxu0 0
        %1309 = vmatpush1.bf16.msra.mxu0 0
        %1310 = vmatprep.subr.bf16.mxu0 0
        %1311 = vmatpush1.bf16.msra.mxu0 0
        %1312 = vmatprep.subr.bf16.mxu0 0
        %1313 = vmatpush1.bf16.msra.mxu0 0
        %1314 = vmatprep.subr.bf16.mxu0 0
        %1315 = vmatpush1.bf16.msra.mxu0 0
        %1316 = vmatprep.subr.bf16.mxu0 0
        %1317 = vmatpush1.bf16.msra.mxu0 0
        %1318 = vmatprep.subr.bf16.mxu0 0
        %1319 = vmatpush1.bf16.msra.mxu0 0
        %1320 = vmatprep.subr.bf16.mxu0 0
        %1321 = vmatpush1.bf16.msra.mxu0 0
        %1322 = vmatprep.mubr.bf16.mxu0 0
        %1323 = vmatmul.mubr.bf16.gmra.mrb[0].mxu0 %v996
        %v1324 = vpop.f32.mrb[0].mxu0
        %v1325 = vadd.f32 %v1240, %v1324
        %v1326 = vpop.f32.mrb[0].mxu0
        %v1327 = vpop.f32.mrb[0].mxu0
        %v1328 = vpop.f32.mrb[0].mxu0
        %1329 = vdwg.mxu0
        %1331 = vrot.lane.b32.xlu0 %v1103, 96
        %v1332 = vpop.permute.xlu0 %1331
        %1334 = vrot.lane.b32.xlu0 %v1103, 64
        %v1335 = vpop.permute.xlu0 %1334
        %1337 = vrot.lane.b32.xlu0 %v1103, 32
        %v1338 = vpop.permute.xlu0 %1337
        %v1340 = vcombine.low %v1103, %v1335
        %v1341 = vcombine.high %v1103, %v1335
        %v1343 = vunpack.c.l.s4 1983009808
        %v1344 = vunpack.c.0.s8 %v1343
        %v1345 = vlaneseq
        %v1346 = vshrl.u32 %v1345, 7
        %v1347 = vsub.s32 %v1344, %v1346
        %v1348 = vrot.slane %v1340, %v1347
        %v1350 = vunpack.c.l.s4 1983009808
        %v1351 = vunpack.c.0.s8 %v1350
        %v1352 = vlaneseq
        %v1353 = vshrl.u32 %v1352, 7
        %v1354 = vsub.s32 %v1351, %v1353
        %v1355 = vrot.slane %v1341, %v1354
        %v1356 = vcombine.low %v1332, %v1338
        %v1357 = vcombine.high %v1332, %v1338
        %v1359 = vunpack.c.l.s4 1983009808
        %v1360 = vunpack.c.0.s8 %v1359
        %v1361 = vlaneseq
        %v1362 = vshrl.u32 %v1361, 7
        %v1363 = vsub.s32 %v1360, %v1362
        %v1364 = vrot.slane %v1356, %v1363
        %v1366 = vunpack.c.l.s4 1983009808
        %v1367 = vunpack.c.0.s8 %v1366
        %v1368 = vlaneseq
        %v1369 = vshrl.u32 %v1368, 7
        %v1370 = vsub.s32 %v1367, %v1369
        %v1371 = vrot.slane %v1357, %v1370
        %v1372 = vcombine.low %v1348, %v1364
        %v1373 = vcombine.high %v1348, %v1364
        %v1375 = vunpack.c.l.s4 1934713408
        %v1376 = vunpack.c.0.s8 %v1375
        %v1377 = vlaneseq
        %v1378 = vshrl.u32 %v1377, 7
        %v1379 = vsub.s32 %v1376, %v1378
        %v1380 = vrot.slane %v1372, %v1379
        %v1382 = vunpack.c.l.s4 1934713408
        %v1383 = vunpack.c.0.s8 %v1382
        %v1384 = vlaneseq
        %v1385 = vshrl.u32 %v1384, 7
        %v1386 = vsub.s32 %v1383, %v1385
        %v1387 = vrot.slane %v1373, %v1386
        %v1388 = vcombine.low %v1355, %v1371
        %v1389 = vcombine.high %v1355, %v1371
        %v1391 = vunpack.c.l.s4 1934713408
        %v1392 = vunpack.c.0.s8 %v1391
        %v1393 = vlaneseq
        %v1394 = vshrl.u32 %v1393, 7
        %v1395 = vsub.s32 %v1392, %v1394
        %v1396 = vrot.slane %v1388, %v1395
        %v1398 = vunpack.c.l.s4 1934713408
        %v1399 = vunpack.c.0.s8 %v1398
        %v1400 = vlaneseq
        %v1401 = vshrl.u32 %v1400, 7
        %v1402 = vsub.s32 %v1399, %v1401
        %v1403 = vrot.slane %v1389, %v1402
        %v1404 = vcombine.high %v1380, 0.0
        %v1405 = vcombine.high %v1387, 0.0
        %v1406 = vcombine.high %v1396, 0.0
        %v1407 = vcombine.high %v1403, 0.0
        %v1408 = vcombine.low %v1380, %v1387
        %v1410 = vunpack.c.l.s4 1983009808
        %v1411 = vunpack.c.0.s8 %v1410
        %v1412 = vlaneseq
        %v1413 = vshrl.u32 %v1412, 7
        %v1414 = vsub.s32 %v1411, %v1413
        %v1415 = vrot.slane %v1408, %v1414
        %v1416 = vcombine.low %v1404, %v1405
        %v1418 = vunpack.c.l.s4 1983009808
        %v1419 = vunpack.c.0.s8 %v1418
        %v1420 = vlaneseq
        %v1421 = vshrl.u32 %v1420, 7
        %v1422 = vsub.s32 %v1419, %v1421
        %v1423 = vrot.slane %v1416, %v1422
        %v1424 = vcombine.low %v1396, %v1403
        %v1426 = vunpack.c.l.s4 1983009808
        %v1427 = vunpack.c.0.s8 %v1426
        %v1428 = vlaneseq
        %v1429 = vshrl.u32 %v1428, 7
        %v1430 = vsub.s32 %v1427, %v1429
        %v1431 = vrot.slane %v1424, %v1430
        %v1432 = vcombine.low %v1406, %v1407
        %v1434 = vunpack.c.l.s4 1983009808
        %v1435 = vunpack.c.0.s8 %v1434
        %v1436 = vlaneseq
        %v1437 = vshrl.u32 %v1436, 7
        %v1438 = vsub.s32 %v1435, %v1437
        %v1439 = vrot.slane %v1432, %v1438
        %v1440 = vcombine.low %v1415, %v1423
        %v1441 = vcombine.high %v1415, %v1423
        %v1443 = vunpack.c.l.s4 1934713408
        %v1444 = vunpack.c.0.s8 %v1443
        %v1445 = vlaneseq
        %v1446 = vshrl.u32 %v1445, 7
        %v1447 = vsub.s32 %v1444, %v1446
        %v1448 = vrot.slane %v1440, %v1447
        %v1450 = vunpack.c.l.s4 1934713408
        %v1451 = vunpack.c.0.s8 %v1450
        %v1452 = vlaneseq
        %v1453 = vshrl.u32 %v1452, 7
        %v1454 = vsub.s32 %v1451, %v1453
        %v1455 = vrot.slane %v1441, %v1454
        %v1456 = vcombine.low %v1431, %v1439
        %v1457 = vcombine.high %v1431, %v1439
        %v1459 = vunpack.c.l.s4 1934713408
        %v1460 = vunpack.c.0.s8 %v1459
        %v1461 = vlaneseq
        %v1462 = vshrl.u32 %v1461, 7
        %v1463 = vsub.s32 %v1460, %v1462
        %v1464 = vrot.slane %v1456, %v1463
        %v1466 = vunpack.c.l.s4 1934713408
        %v1467 = vunpack.c.0.s8 %v1466
        %v1468 = vlaneseq
        %v1469 = vshrl.u32 %v1468, 7
        %v1470 = vsub.s32 %v1467, %v1469
        %v1471 = vrot.slane %v1457, %v1470
        %v1472 = vcombine.low %v1448, %v1464
        %v1473 = vcombine.high %v1448, %v1464
        %v1474 = vcombine.low %v1455, %v1471
        %v1475 = vcombine.high %v1455, %v1471
        %v1476 = vpack.c.bf16 %v1472, %v1472
        %v1477 = vpack.c.bf16 %v1473, %v1473
        %v1478 = vpack.c.bf16 %v1474, %v1474
        %v1479 = vpack.c.bf16 %v1475, %v1475
        %1481 = vrot.lane.b32.xlu0 %v1214, 96
        %v1482 = vpop.permute.xlu0 %1481
        %1484 = vrot.lane.b32.xlu0 %v1214, 64
        %v1485 = vpop.permute.xlu0 %1484
        %1487 = vrot.lane.b32.xlu0 %v1214, 32
        %v1488 = vpop.permute.xlu0 %1487
        %v1490 = vcombine.low %v1214, %v1485
        %v1491 = vcombine.high %v1214, %v1485
        %v1493 = vunpack.c.l.s4 1983009808
        %v1494 = vunpack.c.0.s8 %v1493
        %v1495 = vlaneseq
        %v1496 = vshrl.u32 %v1495, 7
        %v1497 = vsub.s32 %v1494, %v1496
        %v1498 = vrot.slane %v1490, %v1497
        %v1500 = vunpack.c.l.s4 1983009808
        %v1501 = vunpack.c.0.s8 %v1500
        %v1502 = vlaneseq
        %v1503 = vshrl.u32 %v1502, 7
        %v1504 = vsub.s32 %v1501, %v1503
        %v1505 = vrot.slane %v1491, %v1504
        %v1506 = vcombine.low %v1482, %v1488
        %v1507 = vcombine.high %v1482, %v1488
        %v1509 = vunpack.c.l.s4 1983009808
        %v1510 = vunpack.c.0.s8 %v1509
        %v1511 = vlaneseq
        %v1512 = vshrl.u32 %v1511, 7
        %v1513 = vsub.s32 %v1510, %v1512
        %v1514 = vrot.slane %v1506, %v1513
        %v1516 = vunpack.c.l.s4 1983009808
        %v1517 = vunpack.c.0.s8 %v1516
        %v1518 = vlaneseq
        %v1519 = vshrl.u32 %v1518, 7
        %v1520 = vsub.s32 %v1517, %v1519
        %v1521 = vrot.slane %v1507, %v1520
        %v1522 = vcombine.low %v1498, %v1514
        %v1523 = vcombine.high %v1498, %v1514
        %v1525 = vunpack.c.l.s4 1934713408
        %v1526 = vunpack.c.0.s8 %v1525
        %v1527 = vlaneseq
        %v1528 = vshrl.u32 %v1527, 7
        %v1529 = vsub.s32 %v1526, %v1528
        %v1530 = vrot.slane %v1522, %v1529
        %v1532 = vunpack.c.l.s4 1934713408
        %v1533 = vunpack.c.0.s8 %v1532
        %v1534 = vlaneseq
        %v1535 = vshrl.u32 %v1534, 7
        %v1536 = vsub.s32 %v1533, %v1535
        %v1537 = vrot.slane %v1523, %v1536
        %v1538 = vcombine.low %v1505, %v1521
        %v1539 = vcombine.high %v1505, %v1521
        %v1541 = vunpack.c.l.s4 1934713408
        %v1542 = vunpack.c.0.s8 %v1541
        %v1543 = vlaneseq
        %v1544 = vshrl.u32 %v1543, 7
        %v1545 = vsub.s32 %v1542, %v1544
        %v1546 = vrot.slane %v1538, %v1545
        %v1548 = vunpack.c.l.s4 1934713408
        %v1549 = vunpack.c.0.s8 %v1548
        %v1550 = vlaneseq
        %v1551 = vshrl.u32 %v1550, 7
        %v1552 = vsub.s32 %v1549, %v1551
        %v1553 = vrot.slane %v1539, %v1552
        %v1554 = vcombine.high %v1530, 0.0
        %v1555 = vcombine.high %v1537, 0.0
        %v1556 = vcombine.high %v1546, 0.0
        %v1557 = vcombine.high %v1553, 0.0
        %v1558 = vcombine.low %v1530, %v1537
        %v1560 = vunpack.c.l.s4 1983009808
        %v1561 = vunpack.c.0.s8 %v1560
        %v1562 = vlaneseq
        %v1563 = vshrl.u32 %v1562, 7
        %v1564 = vsub.s32 %v1561, %v1563
        %v1565 = vrot.slane %v1558, %v1564
        %v1566 = vcombine.low %v1554, %v1555
        %v1568 = vunpack.c.l.s4 1983009808
        %v1569 = vunpack.c.0.s8 %v1568
        %v1570 = vlaneseq
        %v1571 = vshrl.u32 %v1570, 7
        %v1572 = vsub.s32 %v1569, %v1571
        %v1573 = vrot.slane %v1566, %v1572
        %v1574 = vcombine.low %v1546, %v1553
        %v1576 = vunpack.c.l.s4 1983009808
        %v1577 = vunpack.c.0.s8 %v1576
        %v1578 = vlaneseq
        %v1579 = vshrl.u32 %v1578, 7
        %v1580 = vsub.s32 %v1577, %v1579
        %v1581 = vrot.slane %v1574, %v1580
        %v1582 = vcombine.low %v1556, %v1557
        %v1584 = vunpack.c.l.s4 1983009808
        %v1585 = vunpack.c.0.s8 %v1584
        %v1586 = vlaneseq
        %v1587 = vshrl.u32 %v1586, 7
        %v1588 = vsub.s32 %v1585, %v1587
        %v1589 = vrot.slane %v1582, %v1588
        %v1590 = vcombine.low %v1565, %v1573
        %v1591 = vcombine.high %v1565, %v1573
        %v1593 = vunpack.c.l.s4 1934713408
        %v1594 = vunpack.c.0.s8 %v1593
        %v1595 = vlaneseq
        %v1596 = vshrl.u32 %v1595, 7
        %v1597 = vsub.s32 %v1594, %v1596
        %v1598 = vrot.slane %v1590, %v1597
        %v1600 = vunpack.c.l.s4 1934713408
        %v1601 = vunpack.c.0.s8 %v1600
        %v1602 = vlaneseq
        %v1603 = vshrl.u32 %v1602, 7
        %v1604 = vsub.s32 %v1601, %v1603
        %v1605 = vrot.slane %v1591, %v1604
        %v1606 = vcombine.low %v1581, %v1589
        %v1607 = vcombine.high %v1581, %v1589
        %v1609 = vunpack.c.l.s4 1934713408
        %v1610 = vunpack.c.0.s8 %v1609
        %v1611 = vlaneseq
        %v1612 = vshrl.u32 %v1611, 7
        %v1613 = vsub.s32 %v1610, %v1612
        %v1614 = vrot.slane %v1606, %v1613
        %v1616 = vunpack.c.l.s4 1934713408
        %v1617 = vunpack.c.0.s8 %v1616
        %v1618 = vlaneseq
        %v1619 = vshrl.u32 %v1618, 7
        %v1620 = vsub.s32 %v1617, %v1619
        %v1621 = vrot.slane %v1607, %v1620
        %v1622 = vcombine.low %v1598, %v1614
        %v1623 = vcombine.high %v1598, %v1614
        %v1624 = vcombine.low %v1605, %v1621
        %v1625 = vcombine.high %v1605, %v1621
        %v1626 = vpack.c.bf16 %v1622, %v1622
        %v1627 = vpack.c.bf16 %v1623, %v1623
        %v1628 = vpack.c.bf16 %v1624, %v1624
        %v1629 = vpack.c.bf16 %v1625, %v1625
        %1631 = vrot.lane.b32.xlu0 %v1325, 96
        %v1632 = vpop.permute.xlu0 %1631
        %1634 = vrot.lane.b32.xlu0 %v1325, 64
        %v1635 = vpop.permute.xlu0 %1634
        %1637 = vrot.lane.b32.xlu0 %v1325, 32
        %v1638 = vpop.permute.xlu0 %1637
        %v1640 = vcombine.low %v1325, %v1635
        %v1641 = vcombine.high %v1325, %v1635
        %v1643 = vunpack.c.l.s4 1983009808
        %v1644 = vunpack.c.0.s8 %v1643
        %v1645 = vlaneseq
        %v1646 = vshrl.u32 %v1645, 7
        %v1647 = vsub.s32 %v1644, %v1646
        %v1648 = vrot.slane %v1640, %v1647
        %v1650 = vunpack.c.l.s4 1983009808
        %v1651 = vunpack.c.0.s8 %v1650
        %v1652 = vlaneseq
        %v1653 = vshrl.u32 %v1652, 7
        %v1654 = vsub.s32 %v1651, %v1653
        %v1655 = vrot.slane %v1641, %v1654
        %v1656 = vcombine.low %v1632, %v1638
        %v1657 = vcombine.high %v1632, %v1638
        %v1659 = vunpack.c.l.s4 1983009808
        %v1660 = vunpack.c.0.s8 %v1659
        %v1661 = vlaneseq
        %v1662 = vshrl.u32 %v1661, 7
        %v1663 = vsub.s32 %v1660, %v1662
        %v1664 = vrot.slane %v1656, %v1663
        %v1666 = vunpack.c.l.s4 1983009808
        %v1667 = vunpack.c.0.s8 %v1666
        %v1668 = vlaneseq
        %v1669 = vshrl.u32 %v1668, 7
        %v1670 = vsub.s32 %v1667, %v1669
        %v1671 = vrot.slane %v1657, %v1670
        %v1672 = vcombine.low %v1648, %v1664
        %v1673 = vcombine.high %v1648, %v1664
        %v1675 = vunpack.c.l.s4 1934713408
        %v1676 = vunpack.c.0.s8 %v1675
        %v1677 = vlaneseq
        %v1678 = vshrl.u32 %v1677, 7
        %v1679 = vsub.s32 %v1676, %v1678
        %v1680 = vrot.slane %v1672, %v1679
        %v1682 = vunpack.c.l.s4 1934713408
        %v1683 = vunpack.c.0.s8 %v1682
        %v1684 = vlaneseq
        %v1685 = vshrl.u32 %v1684, 7
        %v1686 = vsub.s32 %v1683, %v1685
        %v1687 = vrot.slane %v1673, %v1686
        %v1688 = vcombine.low %v1655, %v1671
        %v1689 = vcombine.high %v1655, %v1671
        %v1691 = vunpack.c.l.s4 1934713408
        %v1692 = vunpack.c.0.s8 %v1691
        %v1693 = vlaneseq
        %v1694 = vshrl.u32 %v1693, 7
        %v1695 = vsub.s32 %v1692, %v1694
        %v1696 = vrot.slane %v1688, %v1695
        %v1698 = vunpack.c.l.s4 1934713408
        %v1699 = vunpack.c.0.s8 %v1698
        %v1700 = vlaneseq
        %v1701 = vshrl.u32 %v1700, 7
        %v1702 = vsub.s32 %v1699, %v1701
        %v1703 = vrot.slane %v1689, %v1702
        %v1704 = vcombine.high %v1680, 0.0
        %v1705 = vcombine.high %v1687, 0.0
        %v1706 = vcombine.high %v1696, 0.0
        %v1707 = vcombine.high %v1703, 0.0
        %v1708 = vcombine.low %v1680, %v1687
        %v1710 = vunpack.c.l.s4 1983009808
        %v1711 = vunpack.c.0.s8 %v1710
        %v1712 = vlaneseq
        %v1713 = vshrl.u32 %v1712, 7
        %v1714 = vsub.s32 %v1711, %v1713
        %v1715 = vrot.slane %v1708, %v1714
        %v1716 = vcombine.low %v1704, %v1705
        %v1718 = vunpack.c.l.s4 1983009808
        %v1719 = vunpack.c.0.s8 %v1718
        %v1720 = vlaneseq
        %v1721 = vshrl.u32 %v1720, 7
        %v1722 = vsub.s32 %v1719, %v1721
        %v1723 = vrot.slane %v1716, %v1722
        %v1724 = vcombine.low %v1696, %v1703
        %v1726 = vunpack.c.l.s4 1983009808
        %v1727 = vunpack.c.0.s8 %v1726
        %v1728 = vlaneseq
        %v1729 = vshrl.u32 %v1728, 7
        %v1730 = vsub.s32 %v1727, %v1729
        %v1731 = vrot.slane %v1724, %v1730
        %v1732 = vcombine.low %v1706, %v1707
        %v1734 = vunpack.c.l.s4 1983009808
        %v1735 = vunpack.c.0.s8 %v1734
        %v1736 = vlaneseq
        %v1737 = vshrl.u32 %v1736, 7
        %v1738 = vsub.s32 %v1735, %v1737
        %v1739 = vrot.slane %v1732, %v1738
        %v1740 = vcombine.low %v1715, %v1723
        %v1741 = vcombine.high %v1715, %v1723
        %v1743 = vunpack.c.l.s4 1934713408
        %v1744 = vunpack.c.0.s8 %v1743
        %v1745 = vlaneseq
        %v1746 = vshrl.u32 %v1745, 7
        %v1747 = vsub.s32 %v1744, %v1746
        %v1748 = vrot.slane %v1740, %v1747
        %v1750 = vunpack.c.l.s4 1934713408
        %v1751 = vunpack.c.0.s8 %v1750
        %v1752 = vlaneseq
        %v1753 = vshrl.u32 %v1752, 7
        %v1754 = vsub.s32 %v1751, %v1753
        %v1755 = vrot.slane %v1741, %v1754
        %v1756 = vcombine.low %v1731, %v1739
        %v1757 = vcombine.high %v1731, %v1739
        %v1759 = vunpack.c.l.s4 1934713408
        %v1760 = vunpack.c.0.s8 %v1759
        %v1761 = vlaneseq
        %v1762 = vshrl.u32 %v1761, 7
        %v1763 = vsub.s32 %v1760, %v1762
        %v1764 = vrot.slane %v1756, %v1763
        %v1766 = vunpack.c.l.s4 1934713408
        %v1767 = vunpack.c.0.s8 %v1766
        %v1768 = vlaneseq
        %v1769 = vshrl.u32 %v1768, 7
        %v1770 = vsub.s32 %v1767, %v1769
        %v1771 = vrot.slane %v1757, %v1770
        %v1772 = vcombine.low %v1748, %v1764
        %v1773 = vcombine.high %v1748, %v1764
        %v1774 = vcombine.low %v1755, %v1771
        %v1775 = vcombine.high %v1755, %v1771
        %v1776 = vpack.c.bf16 %v1772, %v1772
        %v1777 = vpack.c.bf16 %v1773, %v1773
        %v1778 = vpack.c.bf16 %v1774, %v1774
        %v1779 = vpack.c.bf16 %v1775, %v1775
        %v1780 = vld [vmem:[%s957] sm:$0x1]
        %vm1781 = vcmp.eq.s32.totalorder %v1780, 0
        %v1782 = vsel %vm1781, -1e+09, 0.0
        %vm1783 = vcmask 261120
        %v1785 = vsel %vm1783, %v1476, 0
        %v1788 = vsel %vm1783, %v1626, 0
        %1790 = vmatprep.subr.bf16.mxu0 0
        %1791 = vmatpush1.bf16.xpose.msra.mxu0 %v1788
        %1792 = vmatprep.subr.bf16.mxu0 0
        %1793 = vmatpush1.bf16.xpose.msra.mxu0 0
        %1794 = vmatprep.subr.bf16.mxu0 0
        %1795 = vmatpush1.bf16.xpose.msra.mxu0 0
        %1796 = vmatprep.subr.bf16.mxu0 0
        %1797 = vmatpush1.bf16.xpose.msra.mxu0 0
        %1798 = vmatprep.subr.bf16.mxu0 0
        %1799 = vmatpush1.bf16.xpose.msra.mxu0 0
        %1800 = vmatprep.subr.bf16.mxu0 0
        %1801 = vmatpush1.bf16.xpose.msra.mxu0 0
        %1802 = vmatprep.subr.bf16.mxu0 0
        %1803 = vmatpush1.bf16.xpose.msra.mxu0 0
        %1804 = vmatprep.subr.bf16.mxu0 0
        %1805 = vmatpush1.bf16.xpose.msra.mxu0 0
        %1806 = vmatprep.subr.bf16.mxu0 0
        %1807 = vmatpush1.bf16.xpose.msra.mxu0 0
        %1808 = vmatprep.subr.bf16.mxu0 0
        %1809 = vmatpush1.bf16.xpose.msra.mxu0 0
        %1810 = vmatprep.subr.bf16.mxu0 0
        %1811 = vmatpush1.bf16.xpose.msra.mxu0 0
        %1812 = vmatprep.subr.bf16.mxu0 0
        %1813 = vmatpush1.bf16.xpose.msra.mxu0 0
        %1814 = vmatprep.subr.bf16.mxu0 0
        %1815 = vmatpush1.bf16.xpose.msra.mxu0 0
        %1816 = vmatprep.subr.bf16.mxu0 0
        %1817 = vmatpush1.bf16.xpose.msra.mxu0 0
        %1818 = vmatprep.subr.bf16.mxu0 0
        %1819 = vmatpush1.bf16.xpose.msra.mxu0 0
        %1820 = vmatprep.subr.bf16.mxu0 0
        %1821 = vmatpush1.bf16.xpose.msra.mxu0 0
        %1822 = vmatprep.mubr.bf16.mxu0 0
        %1823 = vmatmul.mubr.bf16.gmra.mrb[0].mxu0 %v1785
        %v1824 = vpop.f32.mrb[0].mxu0
        %v1825 = vadd.f32 0.0, %v1824
        %v1826 = vpop.f32.mrb[0].mxu0
        %v1827 = vpop.f32.mrb[0].mxu0
        %v1828 = vpop.f32.mrb[0].mxu0
        %1829 = vdwg.mxu0
        %v1831 = vsel %vm1783, %v1477, 0
        %v1834 = vsel %vm1783, %v1627, 0
        %1836 = vmatprep.subr.bf16.mxu0 0
        %1837 = vmatpush1.bf16.xpose.msra.mxu0 %v1834
        %1838 = vmatprep.subr.bf16.mxu0 0
        %1839 = vmatpush1.bf16.xpose.msra.mxu0 0
        %1840 = vmatprep.subr.bf16.mxu0 0
        %1841 = vmatpush1.bf16.xpose.msra.mxu0 0
        %1842 = vmatprep.subr.bf16.mxu0 0
        %1843 = vmatpush1.bf16.xpose.msra.mxu0 0
        %1844 = vmatprep.subr.bf16.mxu0 0
        %1845 = vmatpush1.bf16.xpose.msra.mxu0 0
        %1846 = vmatprep.subr.bf16.mxu0 0
        %1847 = vmatpush1.bf16.xpose.msra.mxu0 0
        %1848 = vmatprep.subr.bf16.mxu0 0
        %1849 = vmatpush1.bf16.xpose.msra.mxu0 0
        %1850 = vmatprep.subr.bf16.mxu0 0
        %1851 = vmatpush1.bf16.xpose.msra.mxu0 0
        %1852 = vmatprep.subr.bf16.mxu0 0
        %1853 = vmatpush1.bf16.xpose.msra.mxu0 0
        %1854 = vmatprep.subr.bf16.mxu0 0
        %1855 = vmatpush1.bf16.xpose.msra.mxu0 0
        %1856 = vmatprep.subr.bf16.mxu0 0
        %1857 = vmatpush1.bf16.xpose.msra.mxu0 0
        %1858 = vmatprep.subr.bf16.mxu0 0
        %1859 = vmatpush1.bf16.xpose.msra.mxu0 0
        %1860 = vmatprep.subr.bf16.mxu0 0
        %1861 = vmatpush1.bf16.xpose.msra.mxu0 0
        %1862 = vmatprep.subr.bf16.mxu0 0
        %1863 = vmatpush1.bf16.xpose.msra.mxu0 0
        %1864 = vmatprep.subr.bf16.mxu0 0
        %1865 = vmatpush1.bf16.xpose.msra.mxu0 0
        %1866 = vmatprep.subr.bf16.mxu0 0
        %1867 = vmatpush1.bf16.xpose.msra.mxu0 0
        %1868 = vmatprep.mubr.bf16.mxu0 0
        %1869 = vmatmul.mubr.bf16.gmra.mrb[0].mxu0 %v1831
        %v1870 = vpop.f32.mrb[0].mxu0
        %v1871 = vadd.f32 0.0, %v1870
        %v1872 = vpop.f32.mrb[0].mxu0
        %v1873 = vpop.f32.mrb[0].mxu0
        %v1874 = vpop.f32.mrb[0].mxu0
        %1875 = vdwg.mxu0
        %v1877 = vsel %vm1783, %v1478, 0
        %v1880 = vsel %vm1783, %v1628, 0
        %1882 = vmatprep.subr.bf16.mxu0 0
        %1883 = vmatpush1.bf16.xpose.msra.mxu0 %v1880
        %1884 = vmatprep.subr.bf16.mxu0 0
        %1885 = vmatpush1.bf16.xpose.msra.mxu0 0
        %1886 = vmatprep.subr.bf16.mxu0 0
        %1887 = vmatpush1.bf16.xpose.msra.mxu0 0
        %1888 = vmatprep.subr.bf16.mxu0 0
        %1889 = vmatpush1.bf16.xpose.msra.mxu0 0
        %1890 = vmatprep.subr.bf16.mxu0 0
        %1891 = vmatpush1.bf16.xpose.msra.mxu0 0
        %1892 = vmatprep.subr.bf16.mxu0 0
        %1893 = vmatpush1.bf16.xpose.msra.mxu0 0
        %1894 = vmatprep.subr.bf16.mxu0 0
        %1895 = vmatpush1.bf16.xpose.msra.mxu0 0
        %1896 = vmatprep.subr.bf16.mxu0 0
        %1897 = vmatpush1.bf16.xpose.msra.mxu0 0
        %1898 = vmatprep.subr.bf16.mxu0 0
        %1899 = vmatpush1.bf16.xpose.msra.mxu0 0
        %1900 = vmatprep.subr.bf16.mxu0 0
        %1901 = vmatpush1.bf16.xpose.msra.mxu0 0
        %1902 = vmatprep.subr.bf16.mxu0 0
        %1903 = vmatpush1.bf16.xpose.msra.mxu0 0
        %1904 = vmatprep.subr.bf16.mxu0 0
        %1905 = vmatpush1.bf16.xpose.msra.mxu0 0
        %1906 = vmatprep.subr.bf16.mxu0 0
        %1907 = vmatpush1.bf16.xpose.msra.mxu0 0
        %1908 = vmatprep.subr.bf16.mxu0 0
        %1909 = vmatpush1.bf16.xpose.msra.mxu0 0
        %1910 = vmatprep.subr.bf16.mxu0 0
        %1911 = vmatpush1.bf16.xpose.msra.mxu0 0
        %1912 = vmatprep.subr.bf16.mxu0 0
        %1913 = vmatpush1.bf16.xpose.msra.mxu0 0
        %1914 = vmatprep.mubr.bf16.mxu0 0
        %1915 = vmatmul.mubr.bf16.gmra.mrb[0].mxu0 %v1877
        %v1916 = vpop.f32.mrb[0].mxu0
        %v1917 = vadd.f32 0.0, %v1916
        %v1918 = vpop.f32.mrb[0].mxu0
        %v1919 = vpop.f32.mrb[0].mxu0
        %v1920 = vpop.f32.mrb[0].mxu0
        %1921 = vdwg.mxu0
        %v1923 = vsel %vm1783, %v1479, 0
        %v1926 = vsel %vm1783, %v1629, 0
        %1928 = vmatprep.subr.bf16.mxu0 0
        %1929 = vmatpush1.bf16.xpose.msra.mxu0 %v1926
        %1930 = vmatprep.subr.bf16.mxu0 0
        %1931 = vmatpush1.bf16.xpose.msra.mxu0 0
        %1932 = vmatprep.subr.bf16.mxu0 0
        %1933 = vmatpush1.bf16.xpose.msra.mxu0 0
        %1934 = vmatprep.subr.bf16.mxu0 0
        %1935 = vmatpush1.bf16.xpose.msra.mxu0 0
        %1936 = vmatprep.subr.bf16.mxu0 0
        %1937 = vmatpush1.bf16.xpose.msra.mxu0 0
        %1938 = vmatprep.subr.bf16.mxu0 0
        %1939 = vmatpush1.bf16.xpose.msra.mxu0 0
        %1940 = vmatprep.subr.bf16.mxu0 0
        %1941 = vmatpush1.bf16.xpose.msra.mxu0 0
        %1942 = vmatprep.subr.bf16.mxu0 0
        %1943 = vmatpush1.bf16.xpose.msra.mxu0 0
        %1944 = vmatprep.subr.bf16.mxu0 0
        %1945 = vmatpush1.bf16.xpose.msra.mxu0 0
        %1946 = vmatprep.subr.bf16.mxu0 0
        %1947 = vmatpush1.bf16.xpose.msra.mxu0 0
        %1948 = vmatprep.subr.bf16.mxu0 0
        %1949 = vmatpush1.bf16.xpose.msra.mxu0 0
        %1950 = vmatprep.subr.bf16.mxu0 0
        %1951 = vmatpush1.bf16.xpose.msra.mxu0 0
        %1952 = vmatprep.subr.bf16.mxu0 0
        %1953 = vmatpush1.bf16.xpose.msra.mxu0 0
        %1954 = vmatprep.subr.bf16.mxu0 0
        %1955 = vmatpush1.bf16.xpose.msra.mxu0 0
        %1956 = vmatprep.subr.bf16.mxu0 0
        %1957 = vmatpush1.bf16.xpose.msra.mxu0 0
        %1958 = vmatprep.subr.bf16.mxu0 0
        %1959 = vmatpush1.bf16.xpose.msra.mxu0 0
        %1960 = vmatprep.mubr.bf16.mxu0 0
        %1961 = vmatmul.mubr.bf16.gmra.mrb[0].mxu0 %v1923
        %v1962 = vpop.f32.mrb[0].mxu0
        %v1963 = vadd.f32 0.0, %v1962
        %v1964 = vpop.f32.mrb[0].mxu0
        %v1965 = vpop.f32.mrb[0].mxu0
        %v1966 = vpop.f32.mrb[0].mxu0
        %1967 = vdwg.mxu0
        %v1968 = vmul.f32 %v1825, 0.35355338
        %v1969 = vmul.f32 %v1871, 0.35355338
        %v1970 = vmul.f32 %v1917, 0.35355338
        %v1971 = vmul.f32 %v1963, 0.35355338
        %v1973 = vlaneseq
        %v1974 = vshrl.u32 %v1973, 7
        %v1975 = vsub.s32 0, %v1974
        %v1976 = vrot.slane %v1782, %v1975
        %v1978 = vadd.f32 %v1968, %v1976
        %v1979 = vadd.f32 %v1969, %v1976
        %v1980 = vadd.f32 %v1970, %v1976
        %v1981 = vadd.f32 %v1971, %v1976
        %vm1982 = vcmask 64512
        %v1983 = vsel %vm1982, %v1978, -inf
        %1984 = vmax.xlane.f32.xlu0 %v1983
        %v1985 = vpop.xlane.xlu0 %1984
        %v1986 = vsel %vm1982, %v1979, -inf
        %1987 = vmax.xlane.f32.xlu0 %v1986
        %v1988 = vpop.xlane.xlu0 %1987
        %v1989 = vsel %vm1982, %v1980, -inf
        %1990 = vmax.xlane.f32.xlu0 %v1989
        %v1991 = vpop.xlane.xlu0 %1990
        %v1992 = vsel %vm1982, %v1981, -inf
        %1993 = vmax.xlane.f32.xlu0 %v1992
        %v1994 = vpop.xlane.xlu0 %1993
        %v1995 = vsub.f32 %v1978, %v1985
        %v1996 = vsub.f32 %v1979, %v1988
        %v1997 = vsub.f32 %v1980, %v1991
        %v1998 = vsub.f32 %v1981, %v1994
        %v1999 = vmul.f32 %v1995, 1.442695
        %v2000 = vpow.pop %v1999
        %v2001 = vmul.f32 %v1996, 1.442695
        %v2002 = vpow.pop %v2001
        %v2003 = vmul.f32 %v1997, 1.442695
        %v2004 = vpow.pop %v2003
        %v2005 = vmul.f32 %v1998, 1.442695
        %v2006 = vpow.pop %v2005
        %v2007 = vsel %vm1982, %v2000, 0.0
        %2008 = vadd.xlane.f32.xlu0 %v2007
        %v2009 = vpop.xlane.xlu0 %2008
        %v2010 = vsel %vm1982, %v2002, 0.0
        %2011 = vadd.xlane.f32.xlu0 %v2010
        %v2012 = vpop.xlane.xlu0 %2011
        %v2013 = vsel %vm1982, %v2004, 0.0
        %2014 = vadd.xlane.f32.xlu0 %v2013
        %v2015 = vpop.xlane.xlu0 %2014
        %v2016 = vsel %vm1982, %v2006, 0.0
        %2017 = vadd.xlane.f32.xlu0 %v2016
        %v2018 = vpop.xlane.xlu0 %2017
        %v2019 = vrcp.pop %v2009
        %v2020 = vrcp.pop %v2012
        %v2021 = vrcp.pop %v2015
        %v2022 = vrcp.pop %v2018
        %v2023 = vmul.f32 %v2000, %v2019
        %v2024 = vmul.f32 %v2002, %v2020
        %v2025 = vmul.f32 %v2004, %v2021
        %v2026 = vmul.f32 %v2006, %v2022
        %v2027 = vpack.c.bf16 %v2023, %v2023
        %v2028 = vpack.c.bf16 %v2024, %v2024
        %v2029 = vpack.c.bf16 %v2025, %v2025
        %v2030 = vpack.c.bf16 %v2026, %v2026
        %v2032 = vsel %vm1982, %v2027, 0
        %vm2034 = vcmask 1043456
        %v2036 = vsel %vm2034, %v1776, 0
        %2038 = vmatprep.subr.bf16.mxu0 0
        %2039 = vmatpush1.bf16.msra.mxu0 %v2036
        %2040 = vmatprep.subr.bf16.mxu0 0
        %2041 = vmatpush1.bf16.msra.mxu0 0
        %2042 = vmatprep.subr.bf16.mxu0 0
        %2043 = vmatpush1.bf16.msra.mxu0 0
        %2044 = vmatprep.subr.bf16.mxu0 0
        %2045 = vmatpush1.bf16.msra.mxu0 0
        %2046 = vmatprep.subr.bf16.mxu0 0
        %2047 = vmatpush1.bf16.msra.mxu0 0
        %2048 = vmatprep.subr.bf16.mxu0 0
        %2049 = vmatpush1.bf16.msra.mxu0 0
        %2050 = vmatprep.subr.bf16.mxu0 0
        %2051 = vmatpush1.bf16.msra.mxu0 0
        %2052 = vmatprep.subr.bf16.mxu0 0
        %2053 = vmatpush1.bf16.msra.mxu0 0
        %2054 = vmatprep.subr.bf16.mxu0 0
        %2055 = vmatpush1.bf16.msra.mxu0 0
        %2056 = vmatprep.subr.bf16.mxu0 0
        %2057 = vmatpush1.bf16.msra.mxu0 0
        %2058 = vmatprep.subr.bf16.mxu0 0
        %2059 = vmatpush1.bf16.msra.mxu0 0
        %2060 = vmatprep.subr.bf16.mxu0 0
        %2061 = vmatpush1.bf16.msra.mxu0 0
        %2062 = vmatprep.subr.bf16.mxu0 0
        %2063 = vmatpush1.bf16.msra.mxu0 0
        %2064 = vmatprep.subr.bf16.mxu0 0
        %2065 = vmatpush1.bf16.msra.mxu0 0
        %2066 = vmatprep.subr.bf16.mxu0 0
        %2067 = vmatpush1.bf16.msra.mxu0 0
        %2068 = vmatprep.subr.bf16.mxu0 0
        %2069 = vmatpush1.bf16.msra.mxu0 0
        %2070 = vmatprep.mubr.bf16.mxu0 0
        %2071 = vmatmul.mubr.bf16.gmra.mrb[0].mxu0 %v2032
        %v2072 = vpop.f32.mrb[0].mxu0
        %v2073 = vadd.f32 0.0, %v2072
        %v2074 = vpop.f32.mrb[0].mxu0
        %v2075 = vpop.f32.mrb[0].mxu0
        %v2076 = vpop.f32.mrb[0].mxu0
        %2077 = vdwg.mxu0
        %v2079 = vsel %vm1982, %v2028, 0
        %v2082 = vsel %vm2034, %v1777, 0
        %2084 = vmatprep.subr.bf16.mxu0 0
        %2085 = vmatpush1.bf16.msra.mxu0 %v2082
        %2086 = vmatprep.subr.bf16.mxu0 0
        %2087 = vmatpush1.bf16.msra.mxu0 0
        %2088 = vmatprep.subr.bf16.mxu0 0
        %2089 = vmatpush1.bf16.msra.mxu0 0
        %2090 = vmatprep.subr.bf16.mxu0 0
        %2091 = vmatpush1.bf16.msra.mxu0 0
        %2092 = vmatprep.subr.bf16.mxu0 0
        %2093 = vmatpush1.bf16.msra.mxu0 0
        %2094 = vmatprep.subr.bf16.mxu0 0
        %2095 = vmatpush1.bf16.msra.mxu0 0
        %2096 = vmatprep.subr.bf16.mxu0 0
        %2097 = vmatpush1.bf16.msra.mxu0 0
        %2098 = vmatprep.subr.bf16.mxu0 0
        %2099 = vmatpush1.bf16.msra.mxu0 0
        %2100 = vmatprep.subr.bf16.mxu0 0
        %2101 = vmatpush1.bf16.msra.mxu0 0
        %2102 = vmatprep.subr.bf16.mxu0 0
        %2103 = vmatpush1.bf16.msra.mxu0 0
        %2104 = vmatprep.subr.bf16.mxu0 0
        %2105 = vmatpush1.bf16.msra.mxu0 0
        %2106 = vmatprep.subr.bf16.mxu0 0
        %2107 = vmatpush1.bf16.msra.mxu0 0
        %2108 = vmatprep.subr.bf16.mxu0 0
        %2109 = vmatpush1.bf16.msra.mxu0 0
        %2110 = vmatprep.subr.bf16.mxu0 0
        %2111 = vmatpush1.bf16.msra.mxu0 0
        %2112 = vmatprep.subr.bf16.mxu0 0
        %2113 = vmatpush1.bf16.msra.mxu0 0
        %2114 = vmatprep.subr.bf16.mxu0 0
        %2115 = vmatpush1.bf16.msra.mxu0 0
        %2116 = vmatprep.mubr.bf16.mxu0 0
        %2117 = vmatmul.mubr.bf16.gmra.mrb[0].mxu0 %v2079
        %v2118 = vpop.f32.mrb[0].mxu0
        %v2119 = vadd.f32 0.0, %v2118
        %v2120 = vpop.f32.mrb[0].mxu0
        %v2121 = vpop.f32.mrb[0].mxu0
        %v2122 = vpop.f32.mrb[0].mxu0
        %2123 = vdwg.mxu0
        %v2125 = vsel %vm1982, %v2029, 0
        %v2128 = vsel %vm2034, %v1778, 0
        %2130 = vmatprep.subr.bf16.mxu0 0
        %2131 = vmatpush1.bf16.msra.mxu0 %v2128
        %2132 = vmatprep.subr.bf16.mxu0 0
        %2133 = vmatpush1.bf16.msra.mxu0 0
        %2134 = vmatprep.subr.bf16.mxu0 0
        %2135 = vmatpush1.bf16.msra.mxu0 0
        %2136 = vmatprep.subr.bf16.mxu0 0
        %2137 = vmatpush1.bf16.msra.mxu0 0
        %2138 = vmatprep.subr.bf16.mxu0 0
        %2139 = vmatpush1.bf16.msra.mxu0 0
        %2140 = vmatprep.subr.bf16.mxu0 0
        %2141 = vmatpush1.bf16.msra.mxu0 0
        %2142 = vmatprep.subr.bf16.mxu0 0
        %2143 = vmatpush1.bf16.msra.mxu0 0
        %2144 = vmatprep.subr.bf16.mxu0 0
        %2145 = vmatpush1.bf16.msra.mxu0 0
        %2146 = vmatprep.subr.bf16.mxu0 0
        %2147 = vmatpush1.bf16.msra.mxu0 0
        %2148 = vmatprep.subr.bf16.mxu0 0
        %2149 = vmatpush1.bf16.msra.mxu0 0
        %2150 = vmatprep.subr.bf16.mxu0 0
        %2151 = vmatpush1.bf16.msra.mxu0 0
        %2152 = vmatprep.subr.bf16.mxu0 0
        %2153 = vmatpush1.bf16.msra.mxu0 0
        %2154 = vmatprep.subr.bf16.mxu0 0
        %2155 = vmatpush1.bf16.msra.mxu0 0
        %2156 = vmatprep.subr.bf16.mxu0 0
        %2157 = vmatpush1.bf16.msra.mxu0 0
        %2158 = vmatprep.subr.bf16.mxu0 0
        %2159 = vmatpush1.bf16.msra.mxu0 0
        %2160 = vmatprep.subr.bf16.mxu0 0
        %2161 = vmatpush1.bf16.msra.mxu0 0
        %2162 = vmatprep.mubr.bf16.mxu0 0
        %2163 = vmatmul.mubr.bf16.gmra.mrb[0].mxu0 %v2125
        %v2164 = vpop.f32.mrb[0].mxu0
        %v2165 = vadd.f32 0.0, %v2164
        %v2166 = vpop.f32.mrb[0].mxu0
        %v2167 = vpop.f32.mrb[0].mxu0
        %v2168 = vpop.f32.mrb[0].mxu0
        %2169 = vdwg.mxu0
        %v2171 = vsel %vm1982, %v2030, 0
        %v2174 = vsel %vm2034, %v1779, 0
        %2176 = vmatprep.subr.bf16.mxu0 0
        %2177 = vmatpush1.bf16.msra.mxu0 %v2174
        %2178 = vmatprep.subr.bf16.mxu0 0
        %2179 = vmatpush1.bf16.msra.mxu0 0
        %2180 = vmatprep.subr.bf16.mxu0 0
        %2181 = vmatpush1.bf16.msra.mxu0 0
        %2182 = vmatprep.subr.bf16.mxu0 0
        %2183 = vmatpush1.bf16.msra.mxu0 0
        %2184 = vmatprep.subr.bf16.mxu0 0
        %2185 = vmatpush1.bf16.msra.mxu0 0
        %2186 = vmatprep.subr.bf16.mxu0 0
        %2187 = vmatpush1.bf16.msra.mxu0 0
        %2188 = vmatprep.subr.bf16.mxu0 0
        %2189 = vmatpush1.bf16.msra.mxu0 0
        %2190 = vmatprep.subr.bf16.mxu0 0
        %2191 = vmatpush1.bf16.msra.mxu0 0
        %2192 = vmatprep.subr.bf16.mxu0 0
        %2193 = vmatpush1.bf16.msra.mxu0 0
        %2194 = vmatprep.subr.bf16.mxu0 0
        %2195 = vmatpush1.bf16.msra.mxu0 0
        %2196 = vmatprep.subr.bf16.mxu0 0
        %2197 = vmatpush1.bf16.msra.mxu0 0
        %2198 = vmatprep.subr.bf16.mxu0 0
        %2199 = vmatpush1.bf16.msra.mxu0 0
        %2200 = vmatprep.subr.bf16.mxu0 0
        %2201 = vmatpush1.bf16.msra.mxu0 0
        %2202 = vmatprep.subr.bf16.mxu0 0
        %2203 = vmatpush1.bf16.msra.mxu0 0
        %2204 = vmatprep.subr.bf16.mxu0 0
        %2205 = vmatpush1.bf16.msra.mxu0 0
        %2206 = vmatprep.subr.bf16.mxu0 0
        %2207 = vmatpush1.bf16.msra.mxu0 0
        %2208 = vmatprep.mubr.bf16.mxu0 0
        %2209 = vmatmul.mubr.bf16.gmra.mrb[0].mxu0 %v2171
        %v2210 = vpop.f32.mrb[0].mxu0
        %v2211 = vadd.f32 0.0, %v2210
        %v2212 = vpop.f32.mrb[0].mxu0
        %v2213 = vpop.f32.mrb[0].mxu0
        %v2214 = vpop.f32.mrb[0].mxu0
        %2215 = vdwg.mxu0
        %v2216 = vcombine.low %v2073, %v2165
        %v2217 = vcombine.high %v2073, %v2165
        %v2219 = vunpack.c.l.s4 1983009808
        %v2220 = vunpack.c.0.s8 %v2219
        %v2221 = vlaneseq
        %v2222 = vshrl.u32 %v2221, 7
        %v2223 = vsub.s32 %v2220, %v2222
        %v2224 = vrot.slane %v2216, %v2223
        %v2226 = vunpack.c.l.s4 1983009808
        %v2227 = vunpack.c.0.s8 %v2226
        %v2228 = vlaneseq
        %v2229 = vshrl.u32 %v2228, 7
        %v2230 = vsub.s32 %v2227, %v2229
        %v2231 = vrot.slane %v2217, %v2230
        %v2232 = vcombine.low %v2119, %v2211
        %v2233 = vcombine.high %v2119, %v2211
        %v2235 = vunpack.c.l.s4 1983009808
        %v2236 = vunpack.c.0.s8 %v2235
        %v2237 = vlaneseq
        %v2238 = vshrl.u32 %v2237, 7
        %v2239 = vsub.s32 %v2236, %v2238
        %v2240 = vrot.slane %v2232, %v2239
        %v2242 = vunpack.c.l.s4 1983009808
        %v2243 = vunpack.c.0.s8 %v2242
        %v2244 = vlaneseq
        %v2245 = vshrl.u32 %v2244, 7
        %v2246 = vsub.s32 %v2243, %v2245
        %v2247 = vrot.slane %v2233, %v2246
        %v2248 = vcombine.low %v2224, %v2240
        %v2249 = vcombine.high %v2224, %v2240
        %v2251 = vunpack.c.l.s4 1934713408
        %v2252 = vunpack.c.0.s8 %v2251
        %v2253 = vlaneseq
        %v2254 = vshrl.u32 %v2253, 7
        %v2255 = vsub.s32 %v2252, %v2254
        %v2256 = vrot.slane %v2248, %v2255
        %v2258 = vunpack.c.l.s4 1934713408
        %v2259 = vunpack.c.0.s8 %v2258
        %v2260 = vlaneseq
        %v2261 = vshrl.u32 %v2260, 7
        %v2262 = vsub.s32 %v2259, %v2261
        %v2263 = vrot.slane %v2249, %v2262
        %v2264 = vcombine.low %v2231, %v2247
        %v2265 = vcombine.high %v2231, %v2247
        %v2267 = vunpack.c.l.s4 1934713408
        %v2268 = vunpack.c.0.s8 %v2267
        %v2269 = vlaneseq
        %v2270 = vshrl.u32 %v2269, 7
        %v2271 = vsub.s32 %v2268, %v2270
        %v2272 = vrot.slane %v2264, %v2271
        %v2274 = vunpack.c.l.s4 1934713408
        %v2275 = vunpack.c.0.s8 %v2274
        %v2276 = vlaneseq
        %v2277 = vshrl.u32 %v2276, 7
        %v2278 = vsub.s32 %v2275, %v2277
        %v2279 = vrot.slane %v2265, %v2278
        %v2280 = vcombine.high %v2256, 0.0
        %v2281 = vcombine.high %v2263, 0.0
        %v2282 = vcombine.high %v2272, 0.0
        %v2283 = vcombine.high %v2279, 0.0
        %v2284 = vcombine.low %v2256, %v2263
        %v2286 = vunpack.c.l.s4 1983009808
        %v2287 = vunpack.c.0.s8 %v2286
        %v2288 = vlaneseq
        %v2289 = vshrl.u32 %v2288, 7
        %v2290 = vsub.s32 %v2287, %v2289
        %v2291 = vrot.slane %v2284, %v2290
        %v2292 = vcombine.low %v2280, %v2281
        %v2294 = vunpack.c.l.s4 1983009808
        %v2295 = vunpack.c.0.s8 %v2294
        %v2296 = vlaneseq
        %v2297 = vshrl.u32 %v2296, 7
        %v2298 = vsub.s32 %v2295, %v2297
        %v2299 = vrot.slane %v2292, %v2298
        %v2300 = vcombine.low %v2272, %v2279
        %v2302 = vunpack.c.l.s4 1983009808
        %v2303 = vunpack.c.0.s8 %v2302
        %v2304 = vlaneseq
        %v2305 = vshrl.u32 %v2304, 7
        %v2306 = vsub.s32 %v2303, %v2305
        %v2307 = vrot.slane %v2300, %v2306
        %v2308 = vcombine.low %v2282, %v2283
        %v2310 = vunpack.c.l.s4 1983009808
        %v2311 = vunpack.c.0.s8 %v2310
        %v2312 = vlaneseq
        %v2313 = vshrl.u32 %v2312, 7
        %v2314 = vsub.s32 %v2311, %v2313
        %v2315 = vrot.slane %v2308, %v2314
        %v2316 = vcombine.low %v2291, %v2299
        %v2317 = vcombine.high %v2291, %v2299
        %v2319 = vunpack.c.l.s4 1934713408
        %v2320 = vunpack.c.0.s8 %v2319
        %v2321 = vlaneseq
        %v2322 = vshrl.u32 %v2321, 7
        %v2323 = vsub.s32 %v2320, %v2322
        %v2324 = vrot.slane %v2316, %v2323
        %v2326 = vunpack.c.l.s4 1934713408
        %v2327 = vunpack.c.0.s8 %v2326
        %v2328 = vlaneseq
        %v2329 = vshrl.u32 %v2328, 7
        %v2330 = vsub.s32 %v2327, %v2329
        %v2331 = vrot.slane %v2317, %v2330
        %v2332 = vcombine.low %v2307, %v2315
        %v2333 = vcombine.high %v2307, %v2315
        %v2335 = vunpack.c.l.s4 1934713408
        %v2336 = vunpack.c.0.s8 %v2335
        %v2337 = vlaneseq
        %v2338 = vshrl.u32 %v2337, 7
        %v2339 = vsub.s32 %v2336, %v2338
        %v2340 = vrot.slane %v2332, %v2339
        %v2342 = vunpack.c.l.s4 1934713408
        %v2343 = vunpack.c.0.s8 %v2342
        %v2344 = vlaneseq
        %v2345 = vshrl.u32 %v2344, 7
        %v2346 = vsub.s32 %v2343, %v2345
        %v2347 = vrot.slane %v2333, %v2346
        %v2348 = vcombine.low %v2324, %v2340
        %v2349 = vcombine.high %v2324, %v2340
        %v2350 = vcombine.low %v2331, %v2347
        %v2351 = vcombine.high %v2331, %v2347
        %2353 = vrot.lane.b32.xlu0 %v2349, 32
        %v2354 = vpop.permute.xlu0 %2353
        %2357 = vrot.lane.b32.xlu0 %v2350, 64
        %v2358 = vpop.permute.xlu0 %2357
        %2361 = vrot.lane.b32.xlu0 %v2351, 96
        %v2362 = vpop.permute.xlu0 %2361
        %v2364 = vsel %vm1783, %v2348, %v2354
        %vm2365 = vcmask 523264
        %v2366 = vsel %vm2365, %v2364, %v2358
        %vm2367 = vcmask 785408
        %v2368 = vsel %vm2367, %v2366, %v2362
        %v2369 = vpack.c.bf16 %v2368, %v2368
        %v2370 = vld [vmem:[%s821] sm:$0xf]
        %v2371 = vld [vmem:[%s821 + $0x4] sm:$0xf]
        %v2372 = vld [vmem:[%s821 + $0x8] sm:$0xf]
        %v2373 = vld [vmem:[%s821 + $0xc] sm:$0xf]
        %v2374 = vld [vmem:[%s821 + $0x10] sm:$0xf]
        %v2375 = vld [vmem:[%s821 + $0x14] sm:$0xf]
        %v2376 = vld [vmem:[%s821 + $0x18] sm:$0xf]
        %v2377 = vld [vmem:[%s821 + $0x1c] sm:$0xf]
        %v2378 = vld [vmem:[%s821 + $0x20] sm:$0xf]
        %v2379 = vld [vmem:[%s821 + $0x24] sm:$0xf]
        %v2380 = vld [vmem:[%s821 + $0x28] sm:$0xf]
        %v2381 = vld [vmem:[%s821 + $0x2c] sm:$0xf]
        %v2382 = vld [vmem:[%s821 + $0x30] sm:$0xf]
        %v2383 = vld [vmem:[%s821 + $0x34] sm:$0xf]
        %v2384 = vld [vmem:[%s821 + $0x38] sm:$0xf]
        %v2385 = vld [vmem:[%s821 + $0x3c] sm:$0xf]
        %v2386 = vld [vmem:[%s969] sm:$0x1]
        %v2388 = vlaneseq
        %v2389 = vshrl.u32 %v2388, 7
        %v2390 = vsub.s32 0, %v2389
        %v2391 = vrot.slane %v2386, %v2390
        %v2409 = vunpack.c.l.b16 %v2370
        %v2410 = vunpack.c.l.b16 %v2371
        %v2411 = vunpack.c.l.b16 %v2372
        %v2412 = vunpack.c.l.b16 %v2373
        %v2413 = vunpack.c.l.b16 %v2374
        %v2414 = vunpack.c.l.b16 %v2375
        %v2415 = vunpack.c.l.b16 %v2376
        %v2416 = vunpack.c.l.b16 %v2377
        %v2417 = vunpack.c.l.b16 %v2378
        %v2418 = vunpack.c.l.b16 %v2379
        %v2419 = vunpack.c.l.b16 %v2380
        %v2420 = vunpack.c.l.b16 %v2381
        %v2421 = vunpack.c.l.b16 %v2382
        %v2422 = vunpack.c.l.b16 %v2383
        %v2423 = vunpack.c.l.b16 %v2384
        %v2424 = vunpack.c.l.b16 %v2385
        %v2425 = vpack.c.b16 %v2410, %v2409
        %v2426 = vpack.c.b16 %v2412, %v2411
        %v2427 = vpack.c.b16 %v2414, %v2413
        %v2428 = vpack.c.b16 %v2416, %v2415
        %v2429 = vpack.c.b16 %v2418, %v2417
        %v2430 = vpack.c.b16 %v2420, %v2419
        %v2431 = vpack.c.b16 %v2422, %v2421
        %v2432 = vpack.c.b16 %v2424, %v2423
        %2441 = vmatprep.subr.bf16.mxu0 0
        %2442 = vmatpush1.bf16.msra.mxu0 %v2425
        %2443 = vmatprep.subr.bf16.mxu0 0
        %2444 = vmatpush1.bf16.msra.mxu0 %v2426
        %2445 = vmatprep.subr.bf16.mxu0 0
        %2446 = vmatpush1.bf16.msra.mxu0 %v2427
        %2447 = vmatprep.subr.bf16.mxu0 0
        %2448 = vmatpush1.bf16.msra.mxu0 %v2428
        %2449 = vmatprep.subr.bf16.mxu0 0
        %2450 = vmatpush1.bf16.msra.mxu0 %v2429
        %2451 = vmatprep.subr.bf16.mxu0 0
        %2452 = vmatpush1.bf16.msra.mxu0 %v2430
        %2453 = vmatprep.subr.bf16.mxu0 0
        %2454 = vmatpush1.bf16.msra.mxu0 %v2431
        %2455 = vmatprep.subr.bf16.mxu0 0
        %2456 = vmatpush1.bf16.msra.mxu0 %v2432
        %2457 = vmatprep.subr.bf16.mxu0 0
        %2458 = vmatpush1.bf16.msra.mxu0 0
        %2459 = vmatprep.subr.bf16.mxu0 0
        %2460 = vmatpush1.bf16.msra.mxu0 0
        %2461 = vmatprep.subr.bf16.mxu0 0
        %2462 = vmatpush1.bf16.msra.mxu0 0
        %2463 = vmatprep.subr.bf16.mxu0 0
        %2464 = vmatpush1.bf16.msra.mxu0 0
        %2465 = vmatprep.subr.bf16.mxu0 0
        %2466 = vmatpush1.bf16.msra.mxu0 0
        %2467 = vmatprep.subr.bf16.mxu0 0
        %2468 = vmatpush1.bf16.msra.mxu0 0
        %2469 = vmatprep.subr.bf16.mxu0 0
        %2470 = vmatpush1.bf16.msra.mxu0 0
        %2471 = vmatprep.subr.bf16.mxu0 0
        %2472 = vmatpush1.bf16.msra.mxu0 0
        %2473 = vmatprep.mubr.bf16.mxu0 0
        %2474 = vmatmul.mubr.bf16.gmra.mrb[0].mxu0 %v2369
        %v2475 = vpop.f32.mrb[0].mxu0
        %v2476 = vadd.f32 %v2391, %v2475
        %v2477 = vpop.f32.mrb[0].mxu0
        %v2478 = vpop.f32.mrb[0].mxu0
        %v2479 = vpop.f32.mrb[0].mxu0
        %2480 = vdwg.mxu0
        %v2481 = vadd.f32 %v2476, %v995
        %v2482 = vld [vmem:[%s972] sm:$0x1]
        %v2483 = vld [vmem:[%s975] sm:$0x1]
        %2484 = vadd.xlane.f32.xlu0 %v2481
        %v2485 = vpop.xlane.xlu0 %2484
        %v2486 = vmul.f32 %v2485, 0.03125
        %v2487 = vmul.f32 %v2481, %v2481
        %2488 = vadd.xlane.f32.xlu0 %v2487
        %v2489 = vpop.xlane.xlu0 %2488
        %v2490 = vmul.f32 %v2489, 0.03125
        %v2491 = vmul.f32 %v2486, %v2486
        %v2492 = vsub.f32 %v2490, %v2491
        %v2493 = vsub.f32 %v2481, %v2486
        %v2494 = vadd.f32 %v2492, 1e-05
        %v2495 = vrsqrt.pop %v2494
        %v2496 = vmul.f32 %v2493, %v2495
        %v2498 = vlaneseq
        %v2499 = vshrl.u32 %v2498, 7
        %v2500 = vsub.s32 0, %v2499
        %v2501 = vrot.slane %v2482, %v2500
        %v2503 = vmul.f32 %v2496, %v2501
        %v2505 = vlaneseq
        %v2506 = vshrl.u32 %v2505, 7
        %v2507 = vsub.s32 0, %v2506
        %v2508 = vrot.slane %v2483, %v2507
        %v2510 = vadd.f32 %v2503, %v2508
        %v2511 = vpack.c.bf16 %v2510, %v2510
        %v2512 = vld [vmem:[%s830] sm:$0xf]
        %v2513 = vld [vmem:[%s830 + $0x4] sm:$0xf]
        %v2514 = vld [vmem:[%s830 + $0x8] sm:$0xf]
        %v2515 = vld [vmem:[%s830 + $0xc] sm:$0xf]
        %v2516 = vld [vmem:[%s830 + $0x10] sm:$0xf]
        %v2517 = vld [vmem:[%s830 + $0x14] sm:$0xf]
        %v2518 = vld [vmem:[%s830 + $0x18] sm:$0xf]
        %v2519 = vld [vmem:[%s830 + $0x1c] sm:$0xf]
        %v2520 = vld [vmem:[%s830 + $0x20] sm:$0xf]
        %v2521 = vld [vmem:[%s830 + $0x24] sm:$0xf]
        %v2522 = vld [vmem:[%s830 + $0x28] sm:$0xf]
        %v2523 = vld [vmem:[%s830 + $0x2c] sm:$0xf]
        %v2524 = vld [vmem:[%s830 + $0x30] sm:$0xf]
        %v2525 = vld [vmem:[%s830 + $0x34] sm:$0xf]
        %v2526 = vld [vmem:[%s830 + $0x38] sm:$0xf]
        %v2527 = vld [vmem:[%s830 + $0x3c] sm:$0xf]
        %v2528 = vld [vmem:[%s978] sm:$0x1]
        %v2530 = vlaneseq
        %v2531 = vshrl.u32 %v2530, 7
        %v2532 = vsub.s32 0, %v2531
        %v2533 = vrot.slane %v2528, %v2532
        %v2551 = vunpack.c.l.b16 %v2512
        %v2552 = vunpack.c.l.b16 %v2513
        %v2553 = vunpack.c.l.b16 %v2514
        %v2554 = vunpack.c.l.b16 %v2515
        %v2555 = vunpack.c.l.b16 %v2516
        %v2556 = vunpack.c.l.b16 %v2517
        %v2557 = vunpack.c.l.b16 %v2518
        %v2558 = vunpack.c.l.b16 %v2519
        %v2559 = vunpack.c.l.b16 %v2520
        %v2560 = vunpack.c.l.b16 %v2521
        %v2561 = vunpack.c.l.b16 %v2522
        %v2562 = vunpack.c.l.b16 %v2523
        %v2563 = vunpack.c.l.b16 %v2524
        %v2564 = vunpack.c.l.b16 %v2525
        %v2565 = vunpack.c.l.b16 %v2526
        %v2566 = vunpack.c.l.b16 %v2527
        %v2567 = vpack.c.b16 %v2552, %v2551
        %v2568 = vpack.c.b16 %v2554, %v2553
        %v2569 = vpack.c.b16 %v2556, %v2555
        %v2570 = vpack.c.b16 %v2558, %v2557
        %v2571 = vpack.c.b16 %v2560, %v2559
        %v2572 = vpack.c.b16 %v2562, %v2561
        %v2573 = vpack.c.b16 %v2564, %v2563
        %v2574 = vpack.c.b16 %v2566, %v2565
        %2583 = vmatprep.subr.bf16.mxu0 0
        %2584 = vmatpush1.bf16.msra.mxu0 %v2567
        %2585 = vmatprep.subr.bf16.mxu0 0
        %2586 = vmatpush1.bf16.msra.mxu0 %v2568
        %2587 = vmatprep.subr.bf16.mxu0 0
        %2588 = vmatpush1.bf16.msra.mxu0 %v2569
        %2589 = vmatprep.subr.bf16.mxu0 0
        %2590 = vmatpush1.bf16.msra.mxu0 %v2570
        %2591 = vmatprep.subr.bf16.mxu0 0
        %2592 = vmatpush1.bf16.msra.mxu0 %v2571
        %2593 = vmatprep.subr.bf16.mxu0 0
        %2594 = vmatpush1.bf16.msra.mxu0 %v2572
        %2595 = vmatprep.subr.bf16.mxu0 0
        %2596 = vmatpush1.bf16.msra.mxu0 %v2573
        %2597 = vmatprep.subr.bf16.mxu0 0
        %2598 = vmatpush1.bf16.msra.mxu0 %v2574
        %2599 = vmatprep.subr.bf16.mxu0 0
        %2600 = vmatpush1.bf16.msra.mxu0 0
        %2601 = vmatprep.subr.bf16.mxu0 0
        %2602 = vmatpush1.bf16.msra.mxu0 0
        %2603 = vmatprep.subr.bf16.mxu0 0
        %2604 = vmatpush1.bf16.msra.mxu0 0
        %2605 = vmatprep.subr.bf16.mxu0 0
        %2606 = vmatpush1.bf16.msra.mxu0 0
        %2607 = vmatprep.subr.bf16.mxu0 0
        %2608 = vmatpush1.bf16.msra.mxu0 0
        %2609 = vmatprep.subr.bf16.mxu0 0
        %2610 = vmatpush1.bf16.msra.mxu0 0
        %2611 = vmatprep.subr.bf16.mxu0 0
        %2612 = vmatpush1.bf16.msra.mxu0 0
        %2613 = vmatprep.subr.bf16.mxu0 0
        %2614 = vmatpush1.bf16.msra.mxu0 0
        %2615 = vmatprep.mubr.bf16.mxu0 0
        %2616 = vmatmul.mubr.bf16.gmra.mrb[0].mxu0 %v2511
        %v2617 = vpop.f32.mrb[0].mxu0
        %v2618 = vadd.f32 %v2533, %v2617
        %v2619 = vpop.f32.mrb[0].mxu0
        %v2620 = vpop.f32.mrb[0].mxu0
        %v2621 = vpop.f32.mrb[0].mxu0
        %2622 = vdwg.mxu0
        %v2623 = vmax.f32 %v2618, 0.0
        %v2624 = vpack.c.bf16 %v2623, %v2623
        %v2625 = vld [vmem:[%s839] sm:$0xf]
        %v2626 = vld [vmem:[%s839 + $0x4] sm:$0xf]
        %v2627 = vld [vmem:[%s839 + $0x8] sm:$0xf]
        %v2628 = vld [vmem:[%s839 + $0xc] sm:$0xf]
        %v2629 = vld [vmem:[%s839 + $0x10] sm:$0xf]
        %v2630 = vld [vmem:[%s839 + $0x14] sm:$0xf]
        %v2631 = vld [vmem:[%s839 + $0x18] sm:$0xf]
        %v2632 = vld [vmem:[%s839 + $0x1c] sm:$0xf]
        %v2633 = vld [vmem:[%s839 + $0x20] sm:$0xf]
        %v2634 = vld [vmem:[%s839 + $0x24] sm:$0xf]
        %v2635 = vld [vmem:[%s839 + $0x28] sm:$0xf]
        %v2636 = vld [vmem:[%s839 + $0x2c] sm:$0xf]
        %v2637 = vld [vmem:[%s839 + $0x30] sm:$0xf]
        %v2638 = vld [vmem:[%s839 + $0x34] sm:$0xf]
        %v2639 = vld [vmem:[%s839 + $0x38] sm:$0xf]
        %v2640 = vld [vmem:[%s839 + $0x3c] sm:$0xf]
        %v2641 = vld [vmem:[%s981] sm:$0x1]
        %v2643 = vlaneseq
        %v2644 = vshrl.u32 %v2643, 7
        %v2645 = vsub.s32 0, %v2644
        %v2646 = vrot.slane %v2641, %v2645
        %v2664 = vunpack.c.l.b16 %v2625
        %v2665 = vunpack.c.l.b16 %v2626
        %v2666 = vunpack.c.l.b16 %v2627
        %v2667 = vunpack.c.l.b16 %v2628
        %v2668 = vunpack.c.l.b16 %v2629
        %v2669 = vunpack.c.l.b16 %v2630
        %v2670 = vunpack.c.l.b16 %v2631
        %v2671 = vunpack.c.l.b16 %v2632
        %v2672 = vunpack.c.l.b16 %v2633
        %v2673 = vunpack.c.l.b16 %v2634
        %v2674 = vunpack.c.l.b16 %v2635
        %v2675 = vunpack.c.l.b16 %v2636
        %v2676 = vunpack.c.l.b16 %v2637
        %v2677 = vunpack.c.l.b16 %v2638
        %v2678 = vunpack.c.l.b16 %v2639
        %v2679 = vunpack.c.l.b16 %v2640
        %v2680 = vpack.c.b16 %v2665, %v2664
        %v2681 = vpack.c.b16 %v2667, %v2666
        %v2682 = vpack.c.b16 %v2669, %v2668
        %v2683 = vpack.c.b16 %v2671, %v2670
        %v2684 = vpack.c.b16 %v2673, %v2672
        %v2685 = vpack.c.b16 %v2675, %v2674
        %v2686 = vpack.c.b16 %v2677, %v2676
        %v2687 = vpack.c.b16 %v2679, %v2678
        %2696 = vmatprep.subr.bf16.mxu0 0
        %2697 = vmatpush1.bf16.msra.mxu0 %v2680
        %2698 = vmatprep.subr.bf16.mxu0 0
        %2699 = vmatpush1.bf16.msra.mxu0 %v2681
        %2700 = vmatprep.subr.bf16.mxu0 0
        %2701 = vmatpush1.bf16.msra.mxu0 %v2682
        %2702 = vmatprep.subr.bf16.mxu0 0
        %2703 = vmatpush1.bf16.msra.mxu0 %v2683
        %2704 = vmatprep.subr.bf16.mxu0 0
        %2705 = vmatpush1.bf16.msra.mxu0 %v2684
        %2706 = vmatprep.subr.bf16.mxu0 0
        %2707 = vmatpush1.bf16.msra.mxu0 %v2685
        %2708 = vmatprep.subr.bf16.mxu0 0
        %2709 = vmatpush1.bf16.msra.mxu0 %v2686
        %2710 = vmatprep.subr.bf16.mxu0 0
        %2711 = vmatpush1.bf16.msra.mxu0 %v2687
        %2712 = vmatprep.subr.bf16.mxu0 0
        %2713 = vmatpush1.bf16.msra.mxu0 0
        %2714 = vmatprep.subr.bf16.mxu0 0
        %2715 = vmatpush1.bf16.msra.mxu0 0
        %2716 = vmatprep.subr.bf16.mxu0 0
        %2717 = vmatpush1.bf16.msra.mxu0 0
        %2718 = vmatprep.subr.bf16.mxu0 0
        %2719 = vmatpush1.bf16.msra.mxu0 0
        %2720 = vmatprep.subr.bf16.mxu0 0
        %2721 = vmatpush1.bf16.msra.mxu0 0
        %2722 = vmatprep.subr.bf16.mxu0 0
        %2723 = vmatpush1.bf16.msra.mxu0 0
        %2724 = vmatprep.subr.bf16.mxu0 0
        %2725 = vmatpush1.bf16.msra.mxu0 0
        %2726 = vmatprep.subr.bf16.mxu0 0
        %2727 = vmatpush1.bf16.msra.mxu0 0
        %2728 = vmatprep.mubr.bf16.mxu0 0
        %2729 = vmatmul.mubr.bf16.gmra.mrb[0].mxu0 %v2624
        %v2730 = vpop.f32.mrb[0].mxu0
        %v2731 = vadd.f32 %v2646, %v2730
        %v2732 = vpop.f32.mrb[0].mxu0
        %v2733 = vpop.f32.mrb[0].mxu0
        %v2734 = vpop.f32.mrb[0].mxu0
        %2735 = vdwg.mxu0
        %v2736 = vadd.f32 %v2731, %v2510
        %v2737 = vld [vmem:[%s984] sm:$0x1]
        %v2738 = vld [vmem:[%s987] sm:$0x1]
        %2739 = vadd.xlane.f32.xlu0 %v2736
        %v2740 = vpop.xlane.xlu0 %2739
        %v2741 = vmul.f32 %v2740, 0.03125
        %v2742 = vmul.f32 %v2736, %v2736
        %2743 = vadd.xlane.f32.xlu0 %v2742
        %v2744 = vpop.xlane.xlu0 %2743
        %v2745 = vmul.f32 %v2744, 0.03125
        %v2746 = vmul.f32 %v2741, %v2741
        %v2747 = vsub.f32 %v2745, %v2746
        %v2748 = vsub.f32 %v2736, %v2741
        %v2749 = vadd.f32 %v2747, 1e-05
        %v2750 = vrsqrt.pop %v2749
        %v2751 = vmul.f32 %v2748, %v2750
        %v2753 = vlaneseq
        %v2754 = vshrl.u32 %v2753, 7
        %v2755 = vsub.s32 0, %v2754
        %v2756 = vrot.slane %v2737, %v2755
        %v2758 = vmul.f32 %v2751, %v2756
        %v2760 = vlaneseq
        %v2761 = vshrl.u32 %v2760, 7
        %v2762 = vsub.s32 0, %v2761
        %v2763 = vrot.slane %v2738, %v2762
        %v2765 = vadd.f32 %v2758, %v2763
        %2766 = vst [vmem:[%s954] sm:$0xff] %v2765
        %s2767 = sand.u32 %s532, 1
        %s2768 = scalar_lea.sflag [#allocation4], %s2767
        %s2769 = sand.u32 %s532, 1
        %s2770 = smul.addr %s2769, 8
        %s2771 = scalar_lea.vmem [#allocation14], %s2770
        // Predicated region
        $region125: #{tpu_custom_call.1} parent=91 // pred_check
          %p2772 = pneg %p542
        $region126: #{tpu_custom_call.1} parent=91 // pred_check_branch
          %2774 = sbr.rel (%p2772) target = $region128
        $region127: #{tpu_custom_call.1} parent=91 // pred_region
          %s2776 = ssub.s32 128, 128
          %2777 = vsyncadd %s2768, %s2776
          %s2778 = smul.addr %s48, 128
          %s2779 = scalar_lea.hbm %s18, %s2778
          %s2781 = sshll.u32 %s2771, 4
          %s2782 = int_to_ptr.vmem [resolvable:$true] %s2781
          %2784 = dma.vmem_to_hbm [thread:$0]  %s2782, 128, %s2779, %s2768
        $region128: #{tpu_custom_call.1} parent=91 // pred_fallthru
          _
      $region92: #{tpu_custom_call.1} parent=5 // pred_fallthru
        _
      %p2785 = scmp.le.s32.totalorder 2, %s39
      // Predicated region
      $region129: #{tpu_custom_call.1} parent=5 // pred_check
        %p2786 = pneg %p2785
      $region130: #{tpu_custom_call.1} parent=5 // pred_check_branch
        %2788 = sbr.rel (%p2786) target = $region132
      $region131: #{tpu_custom_call.1} parent=5 // pred_region
        %s2789 = ssub.s32 %s39, 2
        // Predicated region
        $region133: #{tpu_custom_call.1} parent=131 // pred_check
          %p2790 = pneg %p548
        $region134: #{tpu_custom_call.1} parent=131 // pred_check_branch
          %2792 = sbr.rel (%p2790) target = $region136
        $region135: #{tpu_custom_call.1} parent=131 // pred_region
          %s2793 = sand.u32 %s533, 1
          %s2794 = scalar_lea.sflag [#allocation4], %s2793
          %s2795 = sand.u32 %s533, 1
          %s2796 = smul.addr %s2795, 8
          %s2797 = scalar_lea.vmem [#allocation14], %s2796
          %2798 = dma.done %s2794, 128
        $region136: #{tpu_custom_call.1} parent=131 // pred_fallthru
          _
      $region132: #{tpu_custom_call.1} parent=5 // pred_fallthru
        _
    $region6: #{tpu_custom_call.1} parent=1 // loop_footer
      %s43 = sadd.s32 1, %s39
    $region7: #{tpu_custom_call.1} parent=1 // loop_footer_branch
      %38 = sbr.rel target = $region3
    $region8: #{tpu_custom_call.1} parent=1 // loop_exit
      _
    %2799 = vsyncpa [#allocation3], 1
    %s2800 = scalar_lea.sflag [#allocation3], 1
    %2801 = vsyncpa %s2800, 1
    %2802 = vsyncpa [#allocation6], 1
    %s2803 = scalar_lea.sflag [#allocation6], 1
    %2804 = vsyncpa %s2803, 1
    %2805 = vsyncpa [#allocation9], 1
    %s2806 = scalar_lea.sflag [#allocation9], 1
    %2807 = vsyncpa %s2806, 1
    %2808 = vsyncpa [#allocation12], 1
    %s2809 = scalar_lea.sflag [#allocation12], 1
    %2810 = vsyncpa %s2809, 1
    %2811 = vsyncpa [#allocation4], 1
    %s2812 = scalar_lea.sflag [#allocation4], 1
    %2813 = vsyncpa %s2812, 1

</llo_original>
